<compile_context>
chip_gen: v6e
topology: v6e:2x2x1
jax: 0.10.0
libtpu: 0.0.40
codegen_flags: <defaults>
</compile_context>

<pallas_src>
import functools
import math

import jax
import jax.numpy as jnp
import numpy as np
from jax.experimental import pallas as pl
from jax.experimental.pallas import tpu as pltpu

_MASK_BIAS = -2.0e30   # additive bias on non-edge logits
_M_INIT = -1.0e30      # online-softmax running-max init (must be > _MASK_BIAS)
# With this pair, exp(logit - m) is exactly 0 on non-edges even for tiles/rows
# that have not seen any edge yet (exp(-2e30 - (-1e30)) underflows to 0), so no
# per-head select over the (Td, Ts) tile is needed.


def _gat_proj_kernel(x_ref, w_ref, eps_src_ref, eps_dst_ref,
                     feat_ref, z_src_ref, z_dst_ref, mu_ref, lam_ref,
                     *, num_heads, out_feats):
    """Projection + attention stats. Grid: (node_tiles,), 'parallel'.

    One bf16 MXU pass per node tile:  x_tile @ w_comb  where w_comb packs
      cols [0, H*D)          : fc weight (W^T)
      cols [H*D, H*D+H)      : W^T @ blockdiag(mu_src)   -> mu_src  (N, H)
      cols [H*D+H, H*D+2H)   : W^T @ blockdiag(mu_dst)   -> mu_dst  (N, H)
      cols [H*D+2H, H*D+3H)  : W^T @ blockdiag(lam_src)  -> lam     (N, H)
    (lam_dst intentionally reuses the lam_src parameter, as in the original.)
    """
    H, D = num_heads, out_feats
    HD = H * D

    slab = jnp.dot(x_ref[...], w_ref[...],
                   preferred_element_type=jnp.float32)          # (Tn, 128) f32

    mu_s = slab[:, HD:HD + H]                                   # (Tn, H)
    mu_d = slab[:, HD + H:HD + 2 * H]                           # (Tn, H)
    lam = slab[:, HD + 2 * H:HD + 3 * H]                        # (Tn, H)

    # reparameterize: z = eps * exp(0.5 * logvar) + mu  (lam shared src/dst)
    std = jnp.exp(0.5 * lam)
    z_src_ref[...] = eps_src_ref[...] * std + mu_s
    z_dst_ref[...] = eps_dst_ref[...] * std + mu_d

    mu_ref[...] = mu_s + mu_d                                   # mu_src + mu_dst
    lam_ref[...] = 2.0 * lam                                    # lam_src + lam_dst

    # head-major bf16 feat layout (H, N, D) so the attention kernel can index
    # heads on the leading (cheap) axis; H is tiny so a static unroll is fine.
    for h in range(H):
        feat_ref[h] = slab[:, h * D:(h + 1) * D].astype(jnp.bfloat16)


def _gat_attn_kernel(z_dst_ref, z_srcT_ref, feat_ref, scale_ref, out_ref,
                     m_ref, l_ref, acc_ref, *, num_heads, out_feats):
    """Flash-style edge-softmax + aggregation.

    Grid: (dst_tiles, src_tiles) with semantics ('parallel', 'arbitrary').
    Scratch (persistent across the src sweep of one dst tile):
      m_ref   (H, Td, 1)  running max
      l_ref   (H, Td, 1)  running denom
      acc_ref (H, Td, D)  running unnormalized output
    """
    H, D = num_heads, out_feats
    s_idx = pl.program_id(1)

    @pl.when(s_idx == 0)
    def _init():
        m_ref[...] = jnp.full(m_ref.shape, _M_INIT, jnp.float32)
        l_ref[...] = jnp.zeros(l_ref.shape, jnp.float32)
        acc_ref[...] = jnp.zeros(acc_ref.shape, jnp.float32)

    # head-invariant edge terms: computed exactly ONCE per (dst, src) tile.
    scale = scale_ref[...].astype(jnp.float32)                  # (Td, Ts); 0 on non-edges
    neg_bias = jnp.where(scale > 0.0, 0.0, _MASK_BIAS)          # (Td, Ts)

    zd_all = z_dst_ref[...]                                     # (Td, H)
    zsT = z_srcT_ref[...]                                       # (H, Ts)

    for h in range(H):                                          # static unroll; H is small
        zd = zd_all[:, h:h + 1]                                 # (Td, 1) = z_dst[:, h]
        zs = zsT[h:h + 1, :]                                    # (1, Ts) = z_src[:, h]

        e = zd + zs                                             # u_add_v
        e = jnp.where(e > 0.0, e, 0.2 * e)                      # LeakyReLU(0.2)
        logits = e * scale + neg_bias                           # ppmi scaling + edge mask

        m_prev = m_ref[h]                                       # (Td, 1)
        m_new = jnp.maximum(m_prev, jnp.max(logits, axis=1, keepdims=True))
        alpha = jnp.exp(m_prev - m_new)                         # rescale of old stats
        p = jnp.exp(logits - m_new)                             # exactly 0 on non-edges

        l_ref[h] = alpha * l_ref[h] + jnp.sum(p, axis=1, keepdims=True)
        acc_ref[h] = alpha * acc_ref[h] + jnp.dot(
            p.astype(jnp.bfloat16), feat_ref[h],
            preferred_element_type=jnp.float32)                 # (Td, D) MXU
        m_ref[h] = m_new

    @pl.when(s_idx == pl.num_programs(1) - 1)
    def _finalize():
        # Normalize once per dst tile (exact reciprocal; negligible in epilogue).
        # NOTE: assumes every dst node has >= 1 incoming edge
        # (allow_zero_in_degree=False is asserted by the original module).
        outs = []
        for h in range(H):
            inv = pl.reciprocal(l_ref[h], approx=False)         # (Td, 1)
            outs.append(acc_ref[h] * inv)                       # (Td, D)
        out_ref[...] = jnp.concatenate(outs, axis=1)            # (Td, H*D), lane-contiguous


def gat_conv_forward(x, adj, ppmi, params, eps_src, eps_dst, num_heads, out_feats,
                     *, node_tile=128, dst_tile=128, src_tile=128):
    """Fused GATConv forward.

    Returns (rst (N,H,D), mu_src+mu_dst (N,H,1), lam_src+lam_dst (N,H,1)).
    src_tile must be a multiple of 128 (or equal N) for the streamed scale tile.
    """
    N, in_feats = x.shape
    H, D = num_heads, out_feats
    HD = H * D
    assert N % node_tile == 0 and N % dst_tile == 0 and N % src_tile == 0
    slab_w = ((HD + 3 * H + 127) // 128) * 128
    hp = jax.lax.Precision.HIGHEST

    # ---- fold the per-head attention-vector reductions into the fc weight ----
    #   (fc(x).view(N,H,D) * vec).sum(-1)  ==  x @ (W^T @ blockdiag(vec))
    wt = params["fc_w"].T.astype(jnp.float32)                   # (F_in, H*D)

    def head_block_diag(p):                                     # (1, H, D) -> (H*D, H)
        m = jnp.zeros((HD, H), jnp.float32)
        for h in range(H):
            m = m.at[h * D:(h + 1) * D, h].set(p[0, h, :])
        return m

    w_mu_src = jnp.dot(wt, head_block_diag(params["mu_src"]), precision=hp)
    w_mu_dst = jnp.dot(wt, head_block_diag(params["mu_dst"]), precision=hp)
    w_lam = jnp.dot(wt, head_block_diag(params["lam_src"]), precision=hp)  # lam_dst uses lam_src

    w_comb = jnp.zeros((in_feats, slab_w), jnp.float32)
    w_comb = w_comb.at[:, :HD].set(wt)
    w_comb = w_comb.at[:, HD:HD + H].set(w_mu_src)
    w_comb = w_comb.at[:, HD + H:HD + 2 * H].set(w_mu_dst)
    w_comb = w_comb.at[:, HD + 2 * H:HD + 3 * H].set(w_lam)
    w_comb = w_comb.astype(jnp.bfloat16)

    # features passed ONCE, already bf16 (halves feature HBM traffic, no in-kernel cast)
    x_bf = x.astype(jnp.bfloat16)

    # ---- single precomputed bf16 masked scale matrix (replaces adj + ppmi) ----
    # 0 on non-edges, clamp(log(clamp(log(ppmi),1)),1) >= 1 on edges.
    scale = jnp.maximum(jnp.log(jnp.maximum(jnp.log(ppmi), 1.0)), 1.0)
    scale_m = jnp.where(adj > 0, scale, 0.0).astype(jnp.bfloat16)

    # ---------------- kernel 1: projection + per-node stats ----------------
    feat_hd, z_src, z_dst, mu_sum, lam_sum = pl.pallas_call(
        functools.partial(_gat_proj_kernel, num_heads=H, out_feats=D),
        out_shape=(
            jax.ShapeDtypeStruct((H, N, D), jnp.bfloat16),       # feat, head-major
            jax.ShapeDtypeStruct((N, H), jnp.float32),           # z_src
            jax.ShapeDtypeStruct((N, H), jnp.float32),           # z_dst
            jax.ShapeDtypeStruct((N, H), jnp.float32),           # mu_src + mu_dst
            jax.ShapeDtypeStruct((N, H), jnp.float32),           # lam_src + lam_dst
        ),
        grid_spec=pltpu.PrefetchScalarGridSpec(
            num_scalar_prefetch=0,
            grid=(N // node_tile,),
            in_specs=[
                pl.BlockSpec((node_tile, in_feats), lambda i: (i, 0)),
                pl.BlockSpec((in_feats, slab_w), lambda i: (0, 0)),
                pl.BlockSpec((node_tile, H), lambda i: (i, 0)),
                pl.BlockSpec((node_tile, H), lambda i: (i, 0)),
            ],
            out_specs=[
                pl.BlockSpec((H, node_tile, D), lambda i: (0, i, 0)),
                pl.BlockSpec((node_tile, H), lambda i: (i, 0)),
                pl.BlockSpec((node_tile, H), lambda i: (i, 0)),
                pl.BlockSpec((node_tile, H), lambda i: (i, 0)),
                pl.BlockSpec((node_tile, H), lambda i: (i, 0)),
            ],
        ),
        compiler_params=pltpu.CompilerParams(
            dimension_semantics=("parallel",),
            vmem_limit_bytes=32 * 1024 * 1024,
        ),
    )(x_bf, w_comb, eps_src, eps_dst)

    # Tiny (N, H) -> (H, N) transpose done by XLA in the wrapper (H lanes only);
    # the full feature matrix is no longer duplicated/transposed.
    z_srcT = z_src.T

    # ------------- kernel 2: flash-style edge softmax + aggregation -------------
    rst_flat = pl.pallas_call(
        functools.partial(_gat_attn_kernel, num_heads=H, out_feats=D),
        out_shape=jax.ShapeDtypeStruct((N, HD), jnp.float32),
        grid_spec=pltpu.PrefetchScalarGridSpec(
            num_scalar_prefetch=0,
            grid=(N // dst_tile, N // src_tile),                 # src (reduction) axis last
            in_specs=[
                pl.BlockSpec((dst_tile, H), lambda i, s: (i, 0)),        # z_dst
                pl.BlockSpec((H, src_tile), lambda i, s: (0, s)),        # z_srcT
                pl.BlockSpec((H, src_tile, D), lambda i, s: (0, s, 0)),  # feat (head-major)
                pl.BlockSpec((dst_tile, src_tile), lambda i, s: (i, s)),  # masked ppmi scale
            ],
            out_specs=pl.BlockSpec((dst_tile, HD), lambda i, s: (i, 0)),
            scratch_shapes=[
                pltpu.VMEM((H, dst_tile, 1), jnp.float32),       # running max
                pltpu.VMEM((H, dst_tile, 1), jnp.float32),       # running denom
                pltpu.VMEM((H, dst_tile, D), jnp.float32),       # running accumulator
            ],
        ),
        compiler_params=pltpu.CompilerParams(
            dimension_semantics=("parallel", "arbitrary"),
            vmem_limit_bytes=32 * 1024 * 1024,
        ),
    )(z_dst, z_srcT, feat_hd, scale_m)

    rst = rst_flat.reshape(N, H, D)            # free reshape: (N, H*D) row-major == (N, H, D)
    return rst, mu_sum[..., None], lam_sum[..., None]


def _reference_forward(x, adj, ppmi, params, eps_src, eps_dst, num_heads, out_feats):
    """Pure-JAX f32 reference mirroring the PyTorch module's forward()."""
    N = x.shape[0]
    H, D = num_heads, out_feats
    hp = jax.lax.Precision.HIGHEST
    feat = jnp.dot(x, params["fc_w"].T, precision=hp)             # (N, H*D)
    feat_hd = feat.reshape(N, H, D)
    mu_src = jnp.sum(feat_hd * params["mu_src"], axis=-1)         # (N, H)
    lam_src = jnp.sum(feat_hd * params["lam_src"], axis=-1)
    mu_dst = jnp.sum(feat_hd * params["mu_dst"], axis=-1)
    lam_dst = lam_src                                             # original applies lam_src to feat_dst
    z_src = eps_src * jnp.exp(0.5 * lam_src) + mu_src
    z_dst = eps_dst * jnp.exp(0.5 * lam_dst) + mu_dst
    scale = jnp.maximum(jnp.log(jnp.maximum(jnp.log(ppmi), 1.0)), 1.0)
    heads = []
    for h in range(H):
        e = z_dst[:, h][:, None] + z_src[:, h][None, :]
        e = jnp.where(e > 0, e, 0.2 * e)
        e2 = e * scale
        logits = jnp.where(adj > 0, e2, -jnp.inf)
        m = jnp.max(logits, axis=1, keepdims=True)
        p = jnp.where(adj > 0, jnp.exp(logits - m), 0.0)
        a = p / jnp.sum(p, axis=1, keepdims=True)
        heads.append(jnp.dot(a, feat_hd[:, h, :], precision=hp))
    rst = jnp.stack(heads, axis=1)                                # (N, H, D)
    return rst, (mu_src + mu_dst)[..., None], (lam_src + lam_dst)[..., None]


if __name__ == "__main__":
    # Small but non-trivial sizes: 2x2 (dst, src) tile grid exercises the
    # flash-style online softmax across src tiles.
    N, in_feats, out_feats, H = 256, 128, 16, 2

    key = jax.random.PRNGKey(0)
    (k_x, k_w, k_mus, k_mud, k_las, k_adj, k_ppmi, k_es, k_ed) = jax.random.split(key, 9)

    # deterministic parameter init (xavier_normal-style std, as in reset_parameters)
    gain = math.sqrt(2.0)
    std_w = gain * math.sqrt(2.0 / (in_feats + H * out_feats))
    std_a = (gain / 30.0) * math.sqrt(2.0 / (H * out_feats + out_feats))
    params = {
        "fc_w": std_w * jax.random.normal(k_w, (H * out_feats, in_feats), jnp.float32),
        "mu_src": std_a * jax.random.normal(k_mus, (1, H, out_feats), jnp.float32),
        "mu_dst": std_a * jax.random.normal(k_mud, (1, H, out_feats), jnp.float32),
        "lam_src": std_a * jax.random.normal(k_las, (1, H, out_feats), jnp.float32),
        # lam_dst parameter exists in the module but is unused in forward().
    }

    # node features
    x = jax.random.normal(k_x, (N, in_feats), jnp.float32)

    # synthetic graph: dense adjacency with self-loops (so in_degree >= 1,
    # satisfying the allow_zero_in_degree check) + positive ppmi edge weights
    # large enough that the log-log scale is non-trivial (> 1) on some edges.
    adj = (jax.random.uniform(k_adj, (N, N)) < 0.05).astype(jnp.float32)
    adj = jnp.maximum(adj, jnp.eye(N, dtype=jnp.float32))
    ppmi_vals = 1.0 + 50.0 * jax.random.uniform(k_ppmi, (N, N), jnp.float32)
    ppmi = jnp.where(adj > 0, ppmi_vals, 1.0)

    # deterministic eps for the reparameterization trick (torch.randn_like equiv.)
    eps_src = jax.random.normal(k_es, (N, H), jnp.float32)
    eps_dst = jax.random.normal(k_ed, (N, H), jnp.float32)

    rst, mu_out, lam_out = gat_conv_forward(
        x, adj, ppmi, params, eps_src, eps_dst, num_heads=H, out_feats=out_feats,
        node_tile=128, dst_tile=128, src_tile=128)
    jax.block_until_ready((rst, mu_out, lam_out))

    assert rst.shape == (N, H, out_feats)
    assert mu_out.shape == (N, H, 1) and lam_out.shape == (N, H, 1)
    assert bool(jnp.all(jnp.isfinite(rst)))

    # Validate the bf16-MXU / bf16-scale kernel pipeline against a pure f32
    # reference (bf16 rounding of x, folded weights and the ppmi scale sets the
    # tolerance; accumulation is f32 and the softmax math is f32 throughout).
    rst_ref, mu_ref, lam_ref = _reference_forward(
        x, adj, ppmi, params, eps_src, eps_dst, H, out_feats)
    np.testing.assert_allclose(np.asarray(rst), np.asarray(rst_ref), rtol=6e-2, atol=5e-2)
    np.testing.assert_allclose(np.asarray(mu_out), np.asarray(mu_ref), rtol=3e-2, atol=1e-2)
    np.testing.assert_allclose(np.asarray(lam_out), np.asarray(lam_ref), rtol=3e-2, atol=1e-2)

    print("KERNEL_OK")
</pallas_src>

<mosaic_0001>
module attributes {stable_mosaic.version = 11 : i64} {
  func.func @_gat_proj_kernel(%arg0: i32, %arg1: memref<128x128xbf16, #tpu.memory_space<vmem>>, %arg2: memref<128x128xbf16, #tpu.memory_space<vmem>>, %arg3: memref<128x2xf32, #tpu.memory_space<vmem>>, %arg4: memref<128x2xf32, #tpu.memory_space<vmem>>, %arg5: memref<2x128x16xbf16, #tpu.memory_space<vmem>>, %arg6: memref<128x2xf32, #tpu.memory_space<vmem>>, %arg7: memref<128x2xf32, #tpu.memory_space<vmem>>, %arg8: memref<128x2xf32, #tpu.memory_space<vmem>>, %arg9: memref<128x2xf32, #tpu.memory_space<vmem>>) attributes {dimension_semantics = [#tpu.dimension_semantics<parallel>], iteration_bounds = array<i64: 2>, scalar_prefetch = 0 : i64, scratch_operands = 0 : i64, tpu.core_type = #tpu.core_type<tc>, window_params = [{transform_indices = @transform_0, window_bounds = array<i64: 128, 128>}, {pipeline_mode = #tpu.pipeline_mode<synchronous>, transform_indices = @transform_1, window_bounds = array<i64: 128, 128>}, {transform_indices = @transform_2, window_bounds = array<i64: 128, 2>}, {transform_indices = @transform_3, window_bounds = array<i64: 128, 2>}, {transform_indices = @transform_4, window_bounds = array<i64: 2, 128, 16>}, {transform_indices = @transform_5, window_bounds = array<i64: 128, 2>}, {transform_indices = @transform_6, window_bounds = array<i64: 128, 2>}, {transform_indices = @transform_7, window_bounds = array<i64: 128, 2>}, {transform_indices = @transform_8, window_bounds = array<i64: 128, 2>}]} {
    %c0 = arith.constant 0 : index
    %c0_0 = arith.constant 0 : index
    %0 = vector.load %arg1[%c0, %c0_0] : memref<128x128xbf16, #tpu.memory_space<vmem>>, vector<128x128xbf16>
    %c0_1 = arith.constant 0 : index
    %c0_2 = arith.constant 0 : index
    %1 = vector.load %arg2[%c0_1, %c0_2] : memref<128x128xbf16, #tpu.memory_space<vmem>>, vector<128x128xbf16>
    %cst = arith.constant dense<0.000000e+00> : vector<128x128xf32>
    %2 = tpu.matmul %0, %1, %cst {dimension_numbers = #tpu.dot_dimension_numbers<[1], [0], [0], [1], [0, 0, 1, 1], [], []>} : vector<128x128xbf16>, vector<128x128xbf16>, vector<128x128xf32> -> vector<128x128xf32>
    %3 = vector.extract_strided_slice %2 {offsets = [0, 32], sizes = [128, 2], strides = [1, 1]} : vector<128x128xf32> to vector<128x2xf32>
    %4 = vector.extract_strided_slice %2 {offsets = [0, 34], sizes = [128, 2], strides = [1, 1]} : vector<128x128xf32> to vector<128x2xf32>
    %5 = vector.extract_strided_slice %2 {offsets = [0, 36], sizes = [128, 2], strides = [1, 1]} : vector<128x128xf32> to vector<128x2xf32>
    %cst_3 = arith.constant 5.000000e-01 : f32
    %6 = vector.broadcast %cst_3 : f32 to vector<128x2xf32>
    %7 = arith.mulf %6, %5 : vector<128x2xf32>
    %8 = math.exp %7 : vector<128x2xf32>
    %c0_4 = arith.constant 0 : index
    %c0_5 = arith.constant 0 : index
    %9 = vector.load %arg3[%c0_4, %c0_5] : memref<128x2xf32, #tpu.memory_space<vmem>>, vector<128x2xf32>
    %10 = arith.mulf %9, %8 : vector<128x2xf32>
    %11 = arith.addf %10, %3 : vector<128x2xf32>
    %c0_6 = arith.constant 0 : index
    %c0_7 = arith.constant 0 : index
    %12 = vector.load %arg6[%c0_6, %c0_7] : memref<128x2xf32, #tpu.memory_space<vmem>>, vector<128x2xf32>
    tpu.vector_store %arg6[%c0_6, %c0_7], %11 {strides = array<i32>} : memref<128x2xf32, #tpu.memory_space<vmem>>, vector<128x2xf32>,
    %c0_8 = arith.constant 0 : index
    %c0_9 = arith.constant 0 : index
    %13 = vector.load %arg4[%c0_8, %c0_9] : memref<128x2xf32, #tpu.memory_space<vmem>>, vector<128x2xf32>
    %14 = arith.mulf %13, %8 : vector<128x2xf32>
    %15 = arith.addf %14, %4 : vector<128x2xf32>
    %c0_10 = arith.constant 0 : index
    %c0_11 = arith.constant 0 : index
    %16 = vector.load %arg7[%c0_10, %c0_11] : memref<128x2xf32, #tpu.memory_space<vmem>>, vector<128x2xf32>
    tpu.vector_store %arg7[%c0_10, %c0_11], %15 {strides = array<i32>} : memref<128x2xf32, #tpu.memory_space<vmem>>, vector<128x2xf32>,
    %17 = arith.addf %3, %4 : vector<128x2xf32>
    %c0_12 = arith.constant 0 : index
    %c0_13 = arith.constant 0 : index
    %18 = vector.load %arg8[%c0_12, %c0_13] : memref<128x2xf32, #tpu.memory_space<vmem>>, vector<128x2xf32>
    tpu.vector_store %arg8[%c0_12, %c0_13], %17 {strides = array<i32>} : memref<128x2xf32, #tpu.memory_space<vmem>>, vector<128x2xf32>,
    %cst_14 = arith.constant 2.000000e+00 : f32
    %19 = vector.broadcast %cst_14 : f32 to vector<128x2xf32>
    %20 = arith.mulf %19, %5 : vector<128x2xf32>
    %c0_15 = arith.constant 0 : index
    %c0_16 = arith.constant 0 : index
    %21 = vector.load %arg9[%c0_15, %c0_16] : memref<128x2xf32, #tpu.memory_space<vmem>>, vector<128x2xf32>
    tpu.vector_store %arg9[%c0_15, %c0_16], %20 {strides = array<i32>} : memref<128x2xf32, #tpu.memory_space<vmem>>, vector<128x2xf32>,
    %22 = vector.extract_strided_slice %2 {offsets = [0, 0], sizes = [128, 16], strides = [1, 1]} : vector<128x128xf32> to vector<128x16xf32>
    %23 = arith.truncf %22 : vector<128x16xf32> to vector<128x16xbf16>
    %c0_17 = arith.constant 0 : index
    %c0_18 = arith.constant 0 : index
    %c0_19 = arith.constant 0 : index
    %24 = vector.load %arg5[%c0_17, %c0_18, %c0_19] : memref<2x128x16xbf16, #tpu.memory_space<vmem>>, vector<1x128x16xbf16>
    %25 = vector.shape_cast %24 : vector<1x128x16xbf16> to vector<128x16xbf16>
    %26 = vector.shape_cast %23 : vector<128x16xbf16> to vector<1x128x16xbf16>
    tpu.vector_store %arg5[%c0_17, %c0_18, %c0_19], %26 {strides = array<i32>} : memref<2x128x16xbf16, #tpu.memory_space<vmem>>, vector<1x128x16xbf16>,
    %27 = vector.extract_strided_slice %2 {offsets = [0, 16], sizes = [128, 16], strides = [1, 1]} : vector<128x128xf32> to vector<128x16xf32>
    %28 = arith.truncf %27 : vector<128x16xf32> to vector<128x16xbf16>
    %c1 = arith.constant 1 : index
    %c0_20 = arith.constant 0 : index
    %c0_21 = arith.constant 0 : index
    %29 = vector.load %arg5[%c1, %c0_20, %c0_21] : memref<2x128x16xbf16, #tpu.memory_space<vmem>>, vector<1x128x16xbf16>
    %30 = vector.shape_cast %29 : vector<1x128x16xbf16> to vector<128x16xbf16>
    %31 = vector.shape_cast %28 : vector<128x16xbf16> to vector<1x128x16xbf16>
    tpu.vector_store %arg5[%c1, %c0_20, %c0_21], %31 {strides = array<i32>} : memref<2x128x16xbf16, #tpu.memory_space<vmem>>, vector<1x128x16xbf16>,
    return
  }
  func.func @transform_0(%arg0: i32) -> (i32, i32) {
    %c0_i32 = arith.constant 0 : i32
    %c0_i32_0 = arith.constant 0 : i32
    return %arg0, %c0_i32 : i32, i32
  }
  func.func @transform_1(%arg0: i32) -> (i32, i32) {
    %c0_i32 = arith.constant 0 : i32
    %c0_i32_0 = arith.constant 0 : i32
    %c0_i32_1 = arith.constant 0 : i32
    return %c0_i32, %c0_i32_0 : i32, i32
  }
  func.func @transform_2(%arg0: i32) -> (i32, i32) {
    %c0_i32 = arith.constant 0 : i32
    %c0_i32_0 = arith.constant 0 : i32
    return %arg0, %c0_i32 : i32, i32
  }
  func.func @transform_3(%arg0: i32) -> (i32, i32) {
    %c0_i32 = arith.constant 0 : i32
    %c0_i32_0 = arith.constant 0 : i32
    return %arg0, %c0_i32 : i32, i32
  }
  func.func @transform_4(%arg0: i32) -> (i32, i32, i32) {
    %c0_i32 = arith.constant 0 : i32
    %c0_i32_0 = arith.constant 0 : i32
    %c0_i32_1 = arith.constant 0 : i32
    return %c0_i32, %arg0, %c0_i32_0 : i32, i32, i32
  }
  func.func @transform_5(%arg0: i32) -> (i32, i32) {
    %c0_i32 = arith.constant 0 : i32
    %c0_i32_0 = arith.constant 0 : i32
    return %arg0, %c0_i32 : i32, i32
  }
  func.func @transform_6(%arg0: i32) -> (i32, i32) {
    %c0_i32 = arith.constant 0 : i32
    %c0_i32_0 = arith.constant 0 : i32
    return %arg0, %c0_i32 : i32, i32
  }
  func.func @transform_7(%arg0: i32) -> (i32, i32) {
    %c0_i32 = arith.constant 0 : i32
    %c0_i32_0 = arith.constant 0 : i32
    return %arg0, %c0_i32 : i32, i32
  }
  func.func @transform_8(%arg0: i32) -> (i32, i32) {
    %c0_i32 = arith.constant 0 : i32
    %c0_i32_0 = arith.constant 0 : i32
    return %arg0, %c0_i32 : i32, i32
  }
}

</mosaic_0001>

<llo_original>
// kernel: tpu_custom_call.1
$region0: #{tpu_custom_call.1}
  #allocation0 [shape = 'u32[]', space=smem, size = 0x4, offset = 0x4, fixed_abs, tag = 'smem constant byte address 0x4 - core index']
  #allocation1 [shape = 'u32[144,128]{1,0:T(1,128)}', space=vmem, size = 0x12000, scoped, tag = 'internal scratch']
  %s0 = inlined_call_operand.vmem [shape: bf16[256,128], index: 0, kind: input, shape index: {}]
  %s1 = inlined_call_operand.vmem [shape: bf16[128,128], index: 1, kind: input, shape index: {}]
  %s2 = inlined_call_operand.vmem [shape: f32[256,2], index: 2, kind: input, shape index: {}]
  %s3 = inlined_call_operand.vmem [shape: f32[256,2], index: 3, kind: input, shape index: {}]
  %s4 = inlined_call_operand.vmem [shape: bf16[2,256,16], index: 4, kind: output, shape index: {0}]
  %s5 = inlined_call_operand.vmem [shape: f32[256,2], index: 5, kind: output, shape index: {1}]
  %s6 = inlined_call_operand.vmem [shape: f32[256,2], index: 6, kind: output, shape index: {2}]
  %s7 = inlined_call_operand.vmem [shape: f32[256,2], index: 7, kind: output, shape index: {3}]
  %s8 = inlined_call_operand.vmem [shape: f32[256,2], index: 8, kind: output, shape index: {4}]
  %9 = xla_tuple %s4, %s5, %s6, %s7, %s8
  %s10 = sld [smem:[#allocation0]]
  $region118: #{tpu_custom_call.1} parent=0
    _
  %s12 = ssub.s32 1, %s10
  %s13 = scalar_select 0, %s12, %s10
  $region1: #{tpu_custom_call.1} parent=0
    #allocation2 [shape = 'u8[131072]{0}', space=vmem, size = 0x20000, scoped, tag = 'output window, operand 0']
    loop: start=0, step=1, limit=4
    $region2: #{tpu_custom_call.1} parent=1 // loop_pre_header
      _
    $region3: #{tpu_custom_call.1} parent=1 // loop_header
      %s15 = sphi 0, %s19
      %p16 = scmp.ge.s32.totalorder %s15, 4
      %s25 = sphi 0, %s27
      %s28 = sphi 0, %s25
      %s29 = sphi 0, %s28
      %s45 = sphi 0, %s29
      %s49 = sphi 0, %s49
      %s51 = sphi 0, %s49
      %s52 = sphi 0, %s51
      %s66 = sphi 0, %s52
      %s72 = sphi 0, %s74
      %s75 = sphi 0, %s72
      %s76 = sphi 0, %s75
      %s92 = sphi 0, %s76
      %s98 = sphi 0, %s100
      %s101 = sphi 0, %s98
      %s102 = sphi 0, %s101
      %s118 = sphi 0, %s102
      %s124 = sphi 0, %s126
      %s127 = sphi 0, %s124
      %s128 = sphi 0, %s127
      %s144 = sphi 0, %s128
      %s150 = sphi 0, %s152
      %s153 = sphi 0, %s150
      %s154 = sphi 0, %s153
      %s170 = sphi 0, %s154
      %s176 = sphi 0, %s178
      %s179 = sphi 0, %s176
      %s180 = sphi 0, %s179
      %s196 = sphi 0, %s180
      %s202 = sphi 0, %s204
      %s205 = sphi 0, %s202
      %s206 = sphi 0, %s205
      %s222 = sphi 0, %s206
      %s228 = sphi 0, %s230
      %s231 = sphi 0, %s228
      %s232 = sphi 0, %s231
      %s248 = sphi 0, %s232
    $region4: #{tpu_custom_call.1} parent=1 // loop_header_branch
      %18 = sbr.rel (%p16) target = $region8
    $region5: #{tpu_custom_call.1} parent=1 // loop_body
      %s20 = ssub.s32 %s15, 1
      %s21 = ssub.s32 %s15, 2
      %s22 = sadd.s32 %s15, 1
      %s23 = ssub.s32 %s15, %s22
      %p24 = scmp.eq.s32.totalorder %s23, 0
      %s26 = sadd.s32 %s25, 1
      %s27 = scalar_select %p24, %s25, %s26
      %p30 = pneg %p24
      %p31 = scmp.eq.s32.totalorder %s15, 1
      %p32 = por %p30, %p31
      %p33 = scmp.ne.s32.totalorder %s25, %s28
      %p34 = scmp.eq.s32.totalorder %s15, 0
      %p35 = por %p33, %p34
      %p36 = scmp.ne.s32.totalorder %s25, %s28
      %p37 = scmp.eq.s32.totalorder %s20, 1
      %p38 = por %p36, %p37
      %p39 = scmp.ne.s32.totalorder %s28, %s29
      %p40 = scmp.eq.s32.totalorder %s20, 0
      %p41 = por %p39, %p40
      %p42 = scmp.ne.s32.totalorder %s28, %s29
      %p43 = scmp.eq.s32.totalorder %s21, 1
      %p44 = por %p42, %p43
      %p46 = scmp.ne.s32.totalorder %s29, %s45
      %p47 = scmp.eq.s32.totalorder %s21, 0
      %p48 = por %p46, %p47
      %s50 = sadd.s32 %s49, 1
      %p53 = scmp.eq.s32.totalorder %s15, 1
      %p54 = scmp.ne.s32.totalorder %s49, %s51
      %p55 = scmp.eq.s32.totalorder %s15, 0
      %p56 = por %p54, %p55
      %p57 = scmp.ne.s32.totalorder %s49, %s51
      %p58 = scmp.eq.s32.totalorder %s20, 1
      %p59 = por %p57, %p58
      %p60 = scmp.ne.s32.totalorder %s51, %s52
      %p61 = scmp.eq.s32.totalorder %s20, 0
      %p62 = por %p60, %p61
      %p63 = scmp.ne.s32.totalorder %s51, %s52
      %p64 = scmp.eq.s32.totalorder %s21, 1
      %p65 = por %p63, %p64
      %p67 = scmp.ne.s32.totalorder %s52, %s66
      %p68 = scmp.eq.s32.totalorder %s21, 0
      %p69 = por %p67, %p68
      %s70 = ssub.s32 %s15, %s22
      %p71 = scmp.eq.s32.totalorder %s70, 0
      %s73 = sadd.s32 %s72, 1
      %s74 = scalar_select %p71, %s72, %s73
      %p77 = pneg %p71
      %p78 = scmp.eq.s32.totalorder %s15, 1
      %p79 = por %p77, %p78
      %p80 = scmp.ne.s32.totalorder %s72, %s75
      %p81 = scmp.eq.s32.totalorder %s15, 0
      %p82 = por %p80, %p81
      %p83 = scmp.ne.s32.totalorder %s72, %s75
      %p84 = scmp.eq.s32.totalorder %s20, 1
      %p85 = por %p83, %p84
      %p86 = scmp.ne.s32.totalorder %s75, %s76
      %p87 = scmp.eq.s32.totalorder %s20, 0
      %p88 = por %p86, %p87
      %p89 = scmp.ne.s32.totalorder %s75, %s76
      %p90 = scmp.eq.s32.totalorder %s21, 1
      %p91 = por %p89, %p90
      %p93 = scmp.ne.s32.totalorder %s76, %s92
      %p94 = scmp.eq.s32.totalorder %s21, 0
      %p95 = por %p93, %p94
      %s96 = ssub.s32 %s15, %s22
      %p97 = scmp.eq.s32.totalorder %s96, 0
      %s99 = sadd.s32 %s98, 1
      %s100 = scalar_select %p97, %s98, %s99
      %p103 = pneg %p97
      %p104 = scmp.eq.s32.totalorder %s15, 1
      %p105 = por %p103, %p104
      %p106 = scmp.ne.s32.totalorder %s98, %s101
      %p107 = scmp.eq.s32.totalorder %s15, 0
      %p108 = por %p106, %p107
      %p109 = scmp.ne.s32.totalorder %s98, %s101
      %p110 = scmp.eq.s32.totalorder %s20, 1
      %p111 = por %p109, %p110
      %p112 = scmp.ne.s32.totalorder %s101, %s102
      %p113 = scmp.eq.s32.totalorder %s20, 0
      %p114 = por %p112, %p113
      %p115 = scmp.ne.s32.totalorder %s101, %s102
      %p116 = scmp.eq.s32.totalorder %s21, 1
      %p117 = por %p115, %p116
      %p119 = scmp.ne.s32.totalorder %s102, %s118
      %p120 = scmp.eq.s32.totalorder %s21, 0
      %p121 = por %p119, %p120
      %s122 = ssub.s32 %s15, %s22
      %p123 = scmp.eq.s32.totalorder %s122, 0
      %s125 = sadd.s32 %s124, 1
      %s126 = scalar_select %p123, %s124, %s125
      %p129 = pneg %p123
      %p130 = scmp.eq.s32.totalorder %s15, 1
      %p131 = por %p129, %p130
      %p132 = scmp.ne.s32.totalorder %s124, %s127
      %p133 = scmp.eq.s32.totalorder %s15, 0
      %p134 = por %p132, %p133
      %p135 = scmp.ne.s32.totalorder %s124, %s127
      %p136 = scmp.eq.s32.totalorder %s20, 1
      %p137 = por %p135, %p136
      %p138 = scmp.ne.s32.totalorder %s127, %s128
      %p139 = scmp.eq.s32.totalorder %s20, 0
      %p140 = por %p138, %p139
      %p141 = scmp.ne.s32.totalorder %s127, %s128
      %p142 = scmp.eq.s32.totalorder %s21, 1
      %p143 = por %p141, %p142
      %p145 = scmp.ne.s32.totalorder %s128, %s144
      %p146 = scmp.eq.s32.totalorder %s21, 0
      %p147 = por %p145, %p146
      %s148 = ssub.s32 %s15, %s22
      %p149 = scmp.eq.s32.totalorder %s148, 0
      %s151 = sadd.s32 %s150, 1
      %s152 = scalar_select %p149, %s150, %s151
      %p155 = pneg %p149
      %p156 = scmp.eq.s32.totalorder %s15, 1
      %p157 = por %p155, %p156
      %p158 = scmp.ne.s32.totalorder %s150, %s153
      %p159 = scmp.eq.s32.totalorder %s15, 0
      %p160 = por %p158, %p159
      %p161 = scmp.ne.s32.totalorder %s150, %s153
      %p162 = scmp.eq.s32.totalorder %s20, 1
      %p163 = por %p161, %p162
      %p164 = scmp.ne.s32.totalorder %s153, %s154
      %p165 = scmp.eq.s32.totalorder %s20, 0
      %p166 = por %p164, %p165
      %p167 = scmp.ne.s32.totalorder %s153, %s154
      %p168 = scmp.eq.s32.totalorder %s21, 1
      %p169 = por %p167, %p168
      %p171 = scmp.ne.s32.totalorder %s154, %s170
      %p172 = scmp.eq.s32.totalorder %s21, 0
      %p173 = por %p171, %p172
      %s174 = ssub.s32 %s15, %s22
      %p175 = scmp.eq.s32.totalorder %s174, 0
      %s177 = sadd.s32 %s176, 1
      %s178 = scalar_select %p175, %s176, %s177
      %p181 = pneg %p175
      %p182 = scmp.eq.s32.totalorder %s15, 1
      %p183 = por %p181, %p182
      %p184 = scmp.ne.s32.totalorder %s176, %s179
      %p185 = scmp.eq.s32.totalorder %s15, 0
      %p186 = por %p184, %p185
      %p187 = scmp.ne.s32.totalorder %s176, %s179
      %p188 = scmp.eq.s32.totalorder %s20, 1
      %p189 = por %p187, %p188
      %p190 = scmp.ne.s32.totalorder %s179, %s180
      %p191 = scmp.eq.s32.totalorder %s20, 0
      %p192 = por %p190, %p191
      %p193 = scmp.ne.s32.totalorder %s179, %s180
      %p194 = scmp.eq.s32.totalorder %s21, 1
      %p195 = por %p193, %p194
      %p197 = scmp.ne.s32.totalorder %s180, %s196
      %p198 = scmp.eq.s32.totalorder %s21, 0
      %p199 = por %p197, %p198
      %s200 = ssub.s32 %s15, %s22
      %p201 = scmp.eq.s32.totalorder %s200, 0
      %s203 = sadd.s32 %s202, 1
      %s204 = scalar_select %p201, %s202, %s203
      %p207 = pneg %p201
      %p208 = scmp.eq.s32.totalorder %s15, 1
      %p209 = por %p207, %p208
      %p210 = scmp.ne.s32.totalorder %s202, %s205
      %p211 = scmp.eq.s32.totalorder %s15, 0
      %p212 = por %p210, %p211
      %p213 = scmp.ne.s32.totalorder %s202, %s205
      %p214 = scmp.eq.s32.totalorder %s20, 1
      %p215 = por %p213, %p214
      %p216 = scmp.ne.s32.totalorder %s205, %s206
      %p217 = scmp.eq.s32.totalorder %s20, 0
      %p218 = por %p216, %p217
      %p219 = scmp.ne.s32.totalorder %s205, %s206
      %p220 = scmp.eq.s32.totalorder %s21, 1
      %p221 = por %p219, %p220
      %p223 = scmp.ne.s32.totalorder %s206, %s222
      %p224 = scmp.eq.s32.totalorder %s21, 0
      %p225 = por %p223, %p224
      %s226 = ssub.s32 %s15, %s22
      %p227 = scmp.eq.s32.totalorder %s226, 0
      %s229 = sadd.s32 %s228, 1
      %s230 = scalar_select %p227, %s228, %s229
      %p233 = pneg %p227
      %p234 = scmp.eq.s32.totalorder %s15, 1
      %p235 = por %p233, %p234
      %p236 = scmp.ne.s32.totalorder %s228, %s231
      %p237 = scmp.eq.s32.totalorder %s15, 0
      %p238 = por %p236, %p237
      %p239 = scmp.ne.s32.totalorder %s228, %s231
      %p240 = scmp.eq.s32.totalorder %s20, 1
      %p241 = por %p239, %p240
      %p242 = scmp.ne.s32.totalorder %s231, %s232
      %p243 = scmp.eq.s32.totalorder %s20, 0
      %p244 = por %p242, %p243
      %p245 = scmp.ne.s32.totalorder %s231, %s232
      %p246 = scmp.eq.s32.totalorder %s21, 1
      %p247 = por %p245, %p246
      %p249 = scmp.ne.s32.totalorder %s232, %s248
      %p250 = scmp.eq.s32.totalorder %s21, 0
      %p251 = por %p249, %p250
      %p252 = scmp.le.s32.totalorder 1, %s15
      %p253 = scmp.lt.s32.totalorder %s15, 3
      %p254 = pnand %p252, %p253
      %p255 = pneg %p254
      // Predicated region
      $region9: #{tpu_custom_call.1} parent=5 // pred_check
        _
      $region10: #{tpu_custom_call.1} parent=5 // pred_check_branch
        %257 = sbr.rel (%p254) target = $region12
      $region11: #{tpu_custom_call.1} parent=5 // pred_region
        %s258 = ssub.s32 %s15, 1
        // Predicated region
        $region13: #{tpu_custom_call.1} parent=11 // pred_check
          %p259 = pneg %p62
        $region14: #{tpu_custom_call.1} parent=11 // pred_check_branch
          %261 = sbr.rel (%p259) target = $region16
        $region15: #{tpu_custom_call.1} parent=11 // pred_region
          _
        $region16: #{tpu_custom_call.1} parent=11 // pred_fallthru
          _
      $region12: #{tpu_custom_call.1} parent=5 // pred_fallthru
        _
      %p262 = scmp.lt.s32.totalorder %s15, 2
      // Predicated region
      $region17: #{tpu_custom_call.1} parent=5 // pred_check
        %p263 = pneg %p262
      $region18: #{tpu_custom_call.1} parent=5 // pred_check_branch
        %265 = sbr.rel (%p263) target = $region20
      $region19: #{tpu_custom_call.1} parent=5 // pred_region
        // Predicated region
        $region21: #{tpu_custom_call.1} parent=19 // pred_check
          %p266 = pneg %p35
        $region22: #{tpu_custom_call.1} parent=19 // pred_check_branch
          %268 = sbr.rel (%p266) target = $region24
        $region23: #{tpu_custom_call.1} parent=19 // pred_region
          %s269 = smul.u32 16, %s15
          %p270 = scmp.lt.s32.totalorder %s269, 31
          %s271 = scalar_select %p270, %s269, 31
          %s272 = smul.addr %s271, 4
          %s273 = scalar_lea.vmem %s0, %s272
          %s274 = smul.u32 16, %s15
        $region24: #{tpu_custom_call.1} parent=19 // pred_fallthru
          _
        // Predicated region
        $region25: #{tpu_custom_call.1} parent=19 // pred_check
          %p275 = pneg %p82
        $region26: #{tpu_custom_call.1} parent=19 // pred_check_branch
          %277 = sbr.rel (%p275) target = $region28
        $region27: #{tpu_custom_call.1} parent=19 // pred_region
          %s278 = smul.u32 16, %s15
          %p279 = scmp.lt.s32.totalorder %s278, 31
          %s280 = scalar_select %p279, %s278, 31
          %s281 = smul.addr %s280, 8
          %s282 = scalar_lea.vmem %s2, %s281
          %s283 = smul.u32 16, %s15
        $region28: #{tpu_custom_call.1} parent=19 // pred_fallthru
          _
        // Predicated region
        $region29: #{tpu_custom_call.1} parent=19 // pred_check
          %p284 = pneg %p108
        $region30: #{tpu_custom_call.1} parent=19 // pred_check_branch
          %286 = sbr.rel (%p284) target = $region32
        $region31: #{tpu_custom_call.1} parent=19 // pred_region
          %s287 = smul.u32 16, %s15
          %p288 = scmp.lt.s32.totalorder %s287, 31
          %s289 = scalar_select %p288, %s287, 31
          %s290 = smul.addr %s289, 8
          %s291 = scalar_lea.vmem %s3, %s290
          %s292 = smul.u32 16, %s15
        $region32: #{tpu_custom_call.1} parent=19 // pred_fallthru
          _
      $region20: #{tpu_custom_call.1} parent=5 // pred_fallthru
        _
      %p293 = scmp.le.s32.totalorder 1, %s15
      %p294 = scmp.lt.s32.totalorder %s15, 3
      %p295 = pnand %p293, %p294
      %p296 = pneg %p295
      // Predicated region
      $region33: #{tpu_custom_call.1} parent=5 // pred_check
        _
      $region34: #{tpu_custom_call.1} parent=5 // pred_check_branch
        %298 = sbr.rel (%p295) target = $region36
      $region35: #{tpu_custom_call.1} parent=5 // pred_region
        %s299 = ssub.s32 %s15, 1
        %s300 = smul.u32 16, %s20
        %p301 = scmp.lt.s32.totalorder %s300, 31
        %s302 = scalar_select %p301, %s300, 31
        %s303 = smul.addr %s302, 4
        %s304 = scalar_lea.vmem %s0, %s303
        %p305 = pneg %p41
        %p306 = pneg %p38
        %p307 = pneg %p62
        %p308 = pneg %p59
        %s309 = smul.u32 16, %s20
        %p310 = scmp.lt.s32.totalorder %s309, 31
        %s311 = scalar_select %p310, %s309, 31
        %s312 = smul.addr %s311, 8
        %s313 = scalar_lea.vmem %s2, %s312
        %p314 = pneg %p88
        %p315 = pneg %p85
        %s316 = smul.u32 16, %s20
        %p317 = scmp.lt.s32.totalorder %s316, 31
        %s318 = scalar_select %p317, %s316, 31
        %s319 = smul.addr %s318, 8
        %s320 = scalar_lea.vmem %s3, %s319
        %p321 = pneg %p114
        %p322 = pneg %p111
        %p323 = pneg %p140
        %p324 = pneg %p137
        %s325 = sand.u32 %s127, 1
        %s326 = sand.u32 %s127, 1
        %s327 = smul.addr %s326, 128
        %s328 = scalar_lea.vmem [#allocation2], %s327
        %p329 = pneg %p166
        %p330 = pneg %p163
        %s331 = smul.u32 16, %s20
        %p332 = scmp.lt.s32.totalorder %s331, 31
        %s333 = scalar_select %p332, %s331, 31
        %s334 = smul.addr %s333, 8
        %s335 = scalar_lea.vmem %s5, %s334
        %p336 = pneg %p192
        %p337 = pneg %p189
        %s338 = smul.u32 16, %s20
        %p339 = scmp.lt.s32.totalorder %s338, 31
        %s340 = scalar_select %p339, %s338, 31
        %s341 = smul.addr %s340, 8
        %s342 = scalar_lea.vmem %s6, %s341
        %p343 = pneg %p218
        %p344 = pneg %p215
        %s345 = smul.u32 16, %s20
        %p346 = scmp.lt.s32.totalorder %s345, 31
        %s347 = scalar_select %p346, %s345, 31
        %s348 = smul.addr %s347, 8
        %s349 = scalar_lea.vmem %s7, %s348
        %p350 = pneg %p244
        %p351 = pneg %p241
        %s352 = smul.u32 16, %s20
        %p353 = scmp.lt.s32.totalorder %s352, 31
        %s354 = scalar_select %p353, %s352, 31
        %s355 = smul.addr %s354, 8
        %s356 = scalar_lea.vmem %s8, %s355
        %s357 = smul.u32 16, %s20
        %p358 = scmp.lt.s32.totalorder %s357, 31
        %s359 = scalar_select %p358, %s357, 31
        %s360 = smul.addr %s359, 4
        %s361 = scalar_lea.vmem %s0, %s360
        %s362 = smul.u32 16, %s20
        %s363 = smul.u32 16, %s20
        %p364 = scmp.lt.s32.totalorder %s363, 31
        %s365 = scalar_select %p364, %s363, 31
        %s366 = smul.addr %s365, 8
        %s367 = scalar_lea.vmem %s2, %s366
        %s368 = smul.u32 16, %s20
        %s369 = smul.u32 16, %s20
        %p370 = scmp.lt.s32.totalorder %s369, 31
        %s371 = scalar_select %p370, %s369, 31
        %s372 = smul.addr %s371, 8
        %s373 = scalar_lea.vmem %s3, %s372
        %s374 = smul.u32 16, %s20
        %s375 = smul.u32 16, %s20
        %s376 = smul.u32 16, %s20
        %p377 = scmp.lt.s32.totalorder %s376, 31
        %s378 = scalar_select %p377, %s376, 31
        %s379 = smul.addr %s378, 8
        %s380 = scalar_lea.vmem %s5, %s379
        %s381 = smul.u32 16, %s20
        %s382 = smul.u32 16, %s20
        %p383 = scmp.lt.s32.totalorder %s382, 31
        %s384 = scalar_select %p383, %s382, 31
        %s385 = smul.addr %s384, 8
        %s386 = scalar_lea.vmem %s6, %s385
        %s387 = smul.u32 16, %s20
        %s388 = smul.u32 16, %s20
        %p389 = scmp.lt.s32.totalorder %s388, 31
        %s390 = scalar_select %p389, %s388, 31
        %s391 = smul.addr %s390, 8
        %s392 = scalar_lea.vmem %s7, %s391
        %s393 = smul.u32 16, %s20
        %s394 = smul.u32 16, %s20
        %p395 = scmp.lt.s32.totalorder %s394, 31
        %s396 = scalar_select %p395, %s394, 31
        %s397 = smul.addr %s396, 8
        %s398 = scalar_lea.vmem %s8, %s397
        %s399 = smul.u32 16, %s20
        %v401 = vld [vmem:[%s361] sm:$0xf]
        %v402 = vld [vmem:[%s361 + $0x4] sm:$0xf]
        %v403 = vld [vmem:[%s361 + $0x8] sm:$0xf]
        %v404 = vld [vmem:[%s361 + $0xc] sm:$0xf]
        %v405 = vld [vmem:[%s361 + $0x10] sm:$0xf]
        %v406 = vld [vmem:[%s361 + $0x14] sm:$0xf]
        %v407 = vld [vmem:[%s361 + $0x18] sm:$0xf]
        %v408 = vld [vmem:[%s361 + $0x1c] sm:$0xf]
        %v409 = vld [vmem:[%s361 + $0x20] sm:$0xf]
        %v410 = vld [vmem:[%s361 + $0x24] sm:$0xf]
        %v411 = vld [vmem:[%s361 + $0x28] sm:$0xf]
        %v412 = vld [vmem:[%s361 + $0x2c] sm:$0xf]
        %v413 = vld [vmem:[%s361 + $0x30] sm:$0xf]
        %v414 = vld [vmem:[%s361 + $0x34] sm:$0xf]
        %v415 = vld [vmem:[%s361 + $0x38] sm:$0xf]
        %v416 = vld [vmem:[%s361 + $0x3c] sm:$0xf]
        %v417 = vld [vmem:[%s1] sm:$0xf]
        %v418 = vld [vmem:[%s1 + $0x4] sm:$0xf]
        %v419 = vld [vmem:[%s1 + $0x8] sm:$0xf]
        %v420 = vld [vmem:[%s1 + $0xc] sm:$0xf]
        %v421 = vld [vmem:[%s1 + $0x10] sm:$0xf]
        %v422 = vld [vmem:[%s1 + $0x14] sm:$0xf]
        %v423 = vld [vmem:[%s1 + $0x18] sm:$0xf]
        %v424 = vld [vmem:[%s1 + $0x1c] sm:$0xf]
        %v425 = vld [vmem:[%s1 + $0x20] sm:$0xf]
        %v426 = vld [vmem:[%s1 + $0x24] sm:$0xf]
        %v427 = vld [vmem:[%s1 + $0x28] sm:$0xf]
        %v428 = vld [vmem:[%s1 + $0x2c] sm:$0xf]
        %v429 = vld [vmem:[%s1 + $0x30] sm:$0xf]
        %v430 = vld [vmem:[%s1 + $0x34] sm:$0xf]
        %v431 = vld [vmem:[%s1 + $0x38] sm:$0xf]
        %v432 = vld [vmem:[%s1 + $0x3c] sm:$0xf]
        %v449 = vunpack.c.l.b16 %v401
        %v450 = vunpack.c.l.b16 %v402
        %v451 = vunpack.c.l.b16 %v403
        %v452 = vunpack.c.l.b16 %v404
        %v453 = vunpack.c.l.b16 %v405
        %v454 = vunpack.c.l.b16 %v406
        %v455 = vunpack.c.l.b16 %v407
        %v456 = vunpack.c.l.b16 %v408
        %v457 = vunpack.c.l.b16 %v409
        %v458 = vunpack.c.l.b16 %v410
        %v459 = vunpack.c.l.b16 %v411
        %v460 = vunpack.c.l.b16 %v412
        %v461 = vunpack.c.l.b16 %v413
        %v462 = vunpack.c.l.b16 %v414
        %v463 = vunpack.c.l.b16 %v415
        %v464 = vunpack.c.l.b16 %v416
        %v465 = vpack.c.b16 %v450, %v449
        %v466 = vpack.c.b16 %v452, %v451
        %v467 = vpack.c.b16 %v454, %v453
        %v468 = vpack.c.b16 %v456, %v455
        %v469 = vpack.c.b16 %v458, %v457
        %v470 = vpack.c.b16 %v460, %v459
        %v471 = vpack.c.b16 %v462, %v461
        %v472 = vpack.c.b16 %v464, %v463
        %v497 = vunpack.c.l.b16 %v417
        %v498 = vunpack.c.l.b16 %v418
        %v499 = vunpack.c.l.b16 %v419
        %v500 = vunpack.c.l.b16 %v420
        %v501 = vunpack.c.l.b16 %v421
        %v502 = vunpack.c.l.b16 %v422
        %v503 = vunpack.c.l.b16 %v423
        %v504 = vunpack.c.l.b16 %v424
        %v505 = vunpack.c.l.b16 %v425
        %v506 = vunpack.c.l.b16 %v426
        %v507 = vunpack.c.l.b16 %v427
        %v508 = vunpack.c.l.b16 %v428
        %v509 = vunpack.c.l.b16 %v429
        %v510 = vunpack.c.l.b16 %v430
        %v511 = vunpack.c.l.b16 %v431
        %v512 = vunpack.c.l.b16 %v432
        %v513 = vpack.c.b16 %v498, %v497
        %v514 = vpack.c.b16 %v500, %v499
        %v515 = vpack.c.b16 %v502, %v501
        %v516 = vpack.c.b16 %v504, %v503
        %v517 = vpack.c.b16 %v506, %v505
        %v518 = vpack.c.b16 %v508, %v507
        %v519 = vpack.c.b16 %v510, %v509
        %v520 = vpack.c.b16 %v512, %v511
        %529 = vmatprep.subr.bf16.mxu0 0
        %530 = vmatpush1.bf16.msra.mxu0 %v520
        %531 = vmatprep.subr.bf16.mxu0 0
        %532 = vmatpush1.bf16.msra.mxu0 %v519
        %533 = vmatprep.subr.bf16.mxu0 0
        %534 = vmatpush1.bf16.msra.mxu0 %v518
        %535 = vmatprep.subr.bf16.mxu0 0
        %536 = vmatpush1.bf16.msra.mxu0 %v517
        %537 = vmatprep.subr.bf16.mxu0 0
        %538 = vmatpush1.bf16.msra.mxu0 %v516
        %539 = vmatprep.subr.bf16.mxu0 0
        %540 = vmatpush1.bf16.msra.mxu0 %v515
        %541 = vmatprep.subr.bf16.mxu0 0
        %542 = vmatpush1.bf16.msra.mxu0 %v514
        %543 = vmatprep.subr.bf16.mxu0 0
        %544 = vmatpush1.bf16.msra.mxu0 %v513
        %545 = vmatprep.subr.bf16.mxu0 0
        %546 = vmatpush2.bf16.msra.mxu0 0
        %547 = vmatprep.subr.bf16.mxu0 0
        %548 = vmatpush2.bf16.msra.mxu0 0
        %549 = vmatprep.subr.bf16.mxu0 0
        %550 = vmatpush2.bf16.msra.mxu0 0
        %551 = vmatprep.subr.bf16.mxu0 0
        %552 = vmatpush2.bf16.msra.mxu0 0
        %553 = vmatprep.subr.bf16.mxu0 0
        %554 = vmatpush2.bf16.msra.mxu0 0
        %555 = vmatprep.subr.bf16.mxu0 0
        %556 = vmatpush2.bf16.msra.mxu0 0
        %557 = vmatprep.subr.bf16.mxu0 0
        %558 = vmatpush2.bf16.msra.mxu0 0
        %559 = vmatprep.subr.bf16.mxu0 0
        %560 = vmatpush2.bf16.msra.mxu0 0
        %561 = vmatprep.mubr.bf16.mxu0 0
        %562 = vmatmul.mubr.bf16.gmra.mxu0 %v465
        %v563 = vpop.f32.mrf.mxu0
        %v564 = vadd.f32 0.0, %v563
        %v565 = vpop.f32.mrf.mxu0
        %v566 = vpop.f32.mrf.mxu0
        %v567 = vadd.f32 0.0, %v566
        %v568 = vpop.f32.mrf.mxu0
        %569 = vmatprep.mubr.bf16.mxu0 0
        %570 = vmatmul.mubr.bf16.gmra.mxu0 %v466
        %v571 = vpop.f32.mrf.mxu0
        %v572 = vadd.f32 0.0, %v571
        %v573 = vpop.f32.mrf.mxu0
        %v574 = vpop.f32.mrf.mxu0
        %v575 = vadd.f32 0.0, %v574
        %v576 = vpop.f32.mrf.mxu0
        %577 = vmatprep.mubr.bf16.mxu0 0
        %578 = vmatmul.mubr.bf16.gmra.mxu0 %v467
        %v579 = vpop.f32.mrf.mxu0
        %v580 = vadd.f32 0.0, %v579
        %v581 = vpop.f32.mrf.mxu0
        %v582 = vpop.f32.mrf.mxu0
        %v583 = vadd.f32 0.0, %v582
        %v584 = vpop.f32.mrf.mxu0
        %585 = vmatprep.mubr.bf16.mxu0 0
        %586 = vmatmul.mubr.bf16.gmra.mxu0 %v468
        %v587 = vpop.f32.mrf.mxu0
        %v588 = vadd.f32 0.0, %v587
        %v589 = vpop.f32.mrf.mxu0
        %v590 = vpop.f32.mrf.mxu0
        %v591 = vadd.f32 0.0, %v590
        %v592 = vpop.f32.mrf.mxu0
        %593 = vmatprep.mubr.bf16.mxu0 0
        %594 = vmatmul.mubr.bf16.gmra.mxu0 %v469
        %v595 = vpop.f32.mrf.mxu0
        %v596 = vadd.f32 0.0, %v595
        %v597 = vpop.f32.mrf.mxu0
        %v598 = vpop.f32.mrf.mxu0
        %v599 = vadd.f32 0.0, %v598
        %v600 = vpop.f32.mrf.mxu0
        %601 = vmatprep.mubr.bf16.mxu0 0
        %602 = vmatmul.mubr.bf16.gmra.mxu0 %v470
        %v603 = vpop.f32.mrf.mxu0
        %v604 = vadd.f32 0.0, %v603
        %v605 = vpop.f32.mrf.mxu0
        %v606 = vpop.f32.mrf.mxu0
        %v607 = vadd.f32 0.0, %v606
        %v608 = vpop.f32.mrf.mxu0
        %609 = vmatprep.mubr.bf16.mxu0 0
        %610 = vmatmul.mubr.bf16.gmra.mxu0 %v471
        %v611 = vpop.f32.mrf.mxu0
        %v612 = vadd.f32 0.0, %v611
        %v613 = vpop.f32.mrf.mxu0
        %v614 = vpop.f32.mrf.mxu0
        %v615 = vadd.f32 0.0, %v614
        %v616 = vpop.f32.mrf.mxu0
        %617 = vmatprep.mubr.bf16.mxu0 0
        %618 = vmatmul.mubr.bf16.gmra.mxu0 %v472
        %v619 = vpop.f32.mrf.mxu0
        %v620 = vadd.f32 0.0, %v619
        %v621 = vpop.f32.mrf.mxu0
        %v622 = vpop.f32.mrf.mxu0
        %v623 = vadd.f32 0.0, %v622
        %v624 = vpop.f32.mrf.mxu0
        %625 = vdwg.mxu0
        %v626 = vmul.f32 %v564, 0.5
        %v627 = vmul.f32 %v567, 0.5
        %v628 = vmul.f32 %v572, 0.5
        %v629 = vmul.f32 %v575, 0.5
        %v630 = vmul.f32 %v580, 0.5
        %v631 = vmul.f32 %v583, 0.5
        %v632 = vmul.f32 %v588, 0.5
        %v633 = vmul.f32 %v591, 0.5
        %v634 = vmul.f32 %v596, 0.5
        %v635 = vmul.f32 %v599, 0.5
        %v636 = vmul.f32 %v604, 0.5
        %v637 = vmul.f32 %v607, 0.5
        %v638 = vmul.f32 %v612, 0.5
        %v639 = vmul.f32 %v615, 0.5
        %v640 = vmul.f32 %v620, 0.5
        %v641 = vmul.f32 %v623, 0.5
        %v642 = vmul.f32 %v626, 1.442695
        %v643 = vpow.pop %v642
        %v644 = vmul.f32 %v627, 1.442695
        %v645 = vpow.pop %v644
        %v646 = vmul.f32 %v628, 1.442695
        %v647 = vpow.pop %v646
        %v648 = vmul.f32 %v629, 1.442695
        %v649 = vpow.pop %v648
        %v650 = vmul.f32 %v630, 1.442695
        %v651 = vpow.pop %v650
        %v652 = vmul.f32 %v631, 1.442695
        %v653 = vpow.pop %v652
        %v654 = vmul.f32 %v632, 1.442695
        %v655 = vpow.pop %v654
        %v656 = vmul.f32 %v633, 1.442695
        %v657 = vpow.pop %v656
        %v658 = vmul.f32 %v634, 1.442695
        %v659 = vpow.pop %v658
        %v660 = vmul.f32 %v635, 1.442695
        %v661 = vpow.pop %v660
        %v662 = vmul.f32 %v636, 1.442695
        %v663 = vpow.pop %v662
        %v664 = vmul.f32 %v637, 1.442695
        %v665 = vpow.pop %v664
        %v666 = vmul.f32 %v638, 1.442695
        %v667 = vpow.pop %v666
        %v668 = vmul.f32 %v639, 1.442695
        %v669 = vpow.pop %v668
        %v670 = vmul.f32 %v640, 1.442695
        %v671 = vpow.pop %v670
        %v672 = vmul.f32 %v641, 1.442695
        %v673 = vpow.pop %v672
        %v674 = vld [vmem:[%s367] sm:$0xff]
        %v675 = vld [vmem:[%s367 + $0x8] sm:$0xff]
        %v676 = vld [vmem:[%s367 + $0x10] sm:$0xff]
        %v677 = vld [vmem:[%s367 + $0x18] sm:$0xff]
        %v678 = vld [vmem:[%s367 + $0x20] sm:$0xff]
        %v679 = vld [vmem:[%s367 + $0x28] sm:$0xff]
        %v680 = vld [vmem:[%s367 + $0x30] sm:$0xff]
        %v681 = vld [vmem:[%s367 + $0x38] sm:$0xff]
        %v682 = vld [vmem:[%s367 + $0x40] sm:$0xff]
        %v683 = vld [vmem:[%s367 + $0x48] sm:$0xff]
        %v684 = vld [vmem:[%s367 + $0x50] sm:$0xff]
        %v685 = vld [vmem:[%s367 + $0x58] sm:$0xff]
        %v686 = vld [vmem:[%s367 + $0x60] sm:$0xff]
        %v687 = vld [vmem:[%s367 + $0x68] sm:$0xff]
        %v688 = vld [vmem:[%s367 + $0x70] sm:$0xff]
        %v689 = vld [vmem:[%s367 + $0x78] sm:$0xff]
        %706 = vrot.lane.b32.xlu0 %v643, 92
        %v707 = vpop.permute.xlu0 %706
        %708 = vrot.lane.b32.xlu0 %v645, 92
        %v709 = vpop.permute.xlu0 %708
        %710 = vrot.lane.b32.xlu0 %v647, 92
        %v711 = vpop.permute.xlu0 %710
        %712 = vrot.lane.b32.xlu0 %v649, 92
        %v713 = vpop.permute.xlu0 %712
        %714 = vrot.lane.b32.xlu0 %v651, 92
        %v715 = vpop.permute.xlu0 %714
        %716 = vrot.lane.b32.xlu0 %v653, 92
        %v717 = vpop.permute.xlu0 %716
        %718 = vrot.lane.b32.xlu0 %v655, 92
        %v719 = vpop.permute.xlu0 %718
        %720 = vrot.lane.b32.xlu0 %v657, 92
        %v721 = vpop.permute.xlu0 %720
        %722 = vrot.lane.b32.xlu0 %v659, 92
        %v723 = vpop.permute.xlu0 %722
        %724 = vrot.lane.b32.xlu0 %v661, 92
        %v725 = vpop.permute.xlu0 %724
        %726 = vrot.lane.b32.xlu0 %v663, 92
        %v727 = vpop.permute.xlu0 %726
        %728 = vrot.lane.b32.xlu0 %v665, 92
        %v729 = vpop.permute.xlu0 %728
        %730 = vrot.lane.b32.xlu0 %v667, 92
        %v731 = vpop.permute.xlu0 %730
        %732 = vrot.lane.b32.xlu0 %v669, 92
        %v733 = vpop.permute.xlu0 %732
        %734 = vrot.lane.b32.xlu0 %v671, 92
        %v735 = vpop.permute.xlu0 %734
        %736 = vrot.lane.b32.xlu0 %v673, 92
        %v737 = vpop.permute.xlu0 %736
        %v754 = vmul.f32 %v674, %v707
        %v755 = vmul.f32 %v675, %v709
        %v756 = vmul.f32 %v676, %v711
        %v757 = vmul.f32 %v677, %v713
        %v758 = vmul.f32 %v678, %v715
        %v759 = vmul.f32 %v679, %v717
        %v760 = vmul.f32 %v680, %v719
        %v761 = vmul.f32 %v681, %v721
        %v762 = vmul.f32 %v682, %v723
        %v763 = vmul.f32 %v683, %v725
        %v764 = vmul.f32 %v684, %v727
        %v765 = vmul.f32 %v685, %v729
        %v766 = vmul.f32 %v686, %v731
        %v767 = vmul.f32 %v687, %v733
        %v768 = vmul.f32 %v688, %v735
        %v769 = vmul.f32 %v689, %v737
        %786 = vrot.lane.b32.xlu0 %v564, 96
        %v787 = vpop.permute.xlu0 %786
        %788 = vrot.lane.b32.xlu0 %v567, 96
        %v789 = vpop.permute.xlu0 %788
        %790 = vrot.lane.b32.xlu0 %v572, 96
        %v791 = vpop.permute.xlu0 %790
        %792 = vrot.lane.b32.xlu0 %v575, 96
        %v793 = vpop.permute.xlu0 %792
        %794 = vrot.lane.b32.xlu0 %v580, 96
        %v795 = vpop.permute.xlu0 %794
        %796 = vrot.lane.b32.xlu0 %v583, 96
        %v797 = vpop.permute.xlu0 %796
        %798 = vrot.lane.b32.xlu0 %v588, 96
        %v799 = vpop.permute.xlu0 %798
        %800 = vrot.lane.b32.xlu0 %v591, 96
        %v801 = vpop.permute.xlu0 %800
        %802 = vrot.lane.b32.xlu0 %v596, 96
        %v803 = vpop.permute.xlu0 %802
        %804 = vrot.lane.b32.xlu0 %v599, 96
        %v805 = vpop.permute.xlu0 %804
        %806 = vrot.lane.b32.xlu0 %v604, 96
        %v807 = vpop.permute.xlu0 %806
        %808 = vrot.lane.b32.xlu0 %v607, 96
        %v809 = vpop.permute.xlu0 %808
        %810 = vrot.lane.b32.xlu0 %v612, 96
        %v811 = vpop.permute.xlu0 %810
        %812 = vrot.lane.b32.xlu0 %v615, 96
        %v813 = vpop.permute.xlu0 %812
        %814 = vrot.lane.b32.xlu0 %v620, 96
        %v815 = vpop.permute.xlu0 %814
        %816 = vrot.lane.b32.xlu0 %v623, 96
        %v817 = vpop.permute.xlu0 %816
        %v834 = vadd.f32 %v754, %v787
        %v835 = vadd.f32 %v755, %v789
        %v836 = vadd.f32 %v756, %v791
        %v837 = vadd.f32 %v757, %v793
        %v838 = vadd.f32 %v758, %v795
        %v839 = vadd.f32 %v759, %v797
        %v840 = vadd.f32 %v760, %v799
        %v841 = vadd.f32 %v761, %v801
        %v842 = vadd.f32 %v762, %v803
        %v843 = vadd.f32 %v763, %v805
        %v844 = vadd.f32 %v764, %v807
        %v845 = vadd.f32 %v765, %v809
        %v846 = vadd.f32 %v766, %v811
        %v847 = vadd.f32 %v767, %v813
        %v848 = vadd.f32 %v768, %v815
        %v849 = vadd.f32 %v769, %v817
        %vm850 = vcmask 15360
        %851 = vst.msk [vmem:[%s380] sm:$0xff] %vm850, %v834
        %852 = vst.msk [vmem:[%s380 + $0x8] sm:$0xff] %vm850, %v835
        %853 = vst.msk [vmem:[%s380 + $0x10] sm:$0xff] %vm850, %v836
        %854 = vst.msk [vmem:[%s380 + $0x18] sm:$0xff] %vm850, %v837
        %855 = vst.msk [vmem:[%s380 + $0x20] sm:$0xff] %vm850, %v838
        %856 = vst.msk [vmem:[%s380 + $0x28] sm:$0xff] %vm850, %v839
        %857 = vst.msk [vmem:[%s380 + $0x30] sm:$0xff] %vm850, %v840
        %858 = vst.msk [vmem:[%s380 + $0x38] sm:$0xff] %vm850, %v841
        %859 = vst.msk [vmem:[%s380 + $0x40] sm:$0xff] %vm850, %v842
        %860 = vst.msk [vmem:[%s380 + $0x48] sm:$0xff] %vm850, %v843
        %861 = vst.msk [vmem:[%s380 + $0x50] sm:$0xff] %vm850, %v844
        %862 = vst.msk [vmem:[%s380 + $0x58] sm:$0xff] %vm850, %v845
        %863 = vst.msk [vmem:[%s380 + $0x60] sm:$0xff] %vm850, %v846
        %864 = vst.msk [vmem:[%s380 + $0x68] sm:$0xff] %vm850, %v847
        %865 = vst.msk [vmem:[%s380 + $0x70] sm:$0xff] %vm850, %v848
        %866 = vst.msk [vmem:[%s380 + $0x78] sm:$0xff] %vm850, %v849
        %v867 = vld [vmem:[%s373] sm:$0xff]
        %v868 = vld [vmem:[%s373 + $0x8] sm:$0xff]
        %v869 = vld [vmem:[%s373 + $0x10] sm:$0xff]
        %v870 = vld [vmem:[%s373 + $0x18] sm:$0xff]
        %v871 = vld [vmem:[%s373 + $0x20] sm:$0xff]
        %v872 = vld [vmem:[%s373 + $0x28] sm:$0xff]
        %v873 = vld [vmem:[%s373 + $0x30] sm:$0xff]
        %v874 = vld [vmem:[%s373 + $0x38] sm:$0xff]
        %v875 = vld [vmem:[%s373 + $0x40] sm:$0xff]
        %v876 = vld [vmem:[%s373 + $0x48] sm:$0xff]
        %v877 = vld [vmem:[%s373 + $0x50] sm:$0xff]
        %v878 = vld [vmem:[%s373 + $0x58] sm:$0xff]
        %v879 = vld [vmem:[%s373 + $0x60] sm:$0xff]
        %v880 = vld [vmem:[%s373 + $0x68] sm:$0xff]
        %v881 = vld [vmem:[%s373 + $0x70] sm:$0xff]
        %v882 = vld [vmem:[%s373 + $0x78] sm:$0xff]
        %v883 = vmul.f32 %v867, %v707
        %v884 = vmul.f32 %v868, %v709
        %v885 = vmul.f32 %v869, %v711
        %v886 = vmul.f32 %v870, %v713
        %v887 = vmul.f32 %v871, %v715
        %v888 = vmul.f32 %v872, %v717
        %v889 = vmul.f32 %v873, %v719
        %v890 = vmul.f32 %v874, %v721
        %v891 = vmul.f32 %v875, %v723
        %v892 = vmul.f32 %v876, %v725
        %v893 = vmul.f32 %v877, %v727
        %v894 = vmul.f32 %v878, %v729
        %v895 = vmul.f32 %v879, %v731
        %v896 = vmul.f32 %v880, %v733
        %v897 = vmul.f32 %v881, %v735
        %v898 = vmul.f32 %v882, %v737
        %899 = vrot.lane.b32.xlu0 %v564, 94
        %v900 = vpop.permute.xlu0 %899
        %901 = vrot.lane.b32.xlu0 %v567, 94
        %v902 = vpop.permute.xlu0 %901
        %903 = vrot.lane.b32.xlu0 %v572, 94
        %v904 = vpop.permute.xlu0 %903
        %905 = vrot.lane.b32.xlu0 %v575, 94
        %v906 = vpop.permute.xlu0 %905
        %907 = vrot.lane.b32.xlu0 %v580, 94
        %v908 = vpop.permute.xlu0 %907
        %909 = vrot.lane.b32.xlu0 %v583, 94
        %v910 = vpop.permute.xlu0 %909
        %911 = vrot.lane.b32.xlu0 %v588, 94
        %v912 = vpop.permute.xlu0 %911
        %913 = vrot.lane.b32.xlu0 %v591, 94
        %v914 = vpop.permute.xlu0 %913
        %915 = vrot.lane.b32.xlu0 %v596, 94
        %v916 = vpop.permute.xlu0 %915
        %917 = vrot.lane.b32.xlu0 %v599, 94
        %v918 = vpop.permute.xlu0 %917
        %919 = vrot.lane.b32.xlu0 %v604, 94
        %v920 = vpop.permute.xlu0 %919
        %921 = vrot.lane.b32.xlu0 %v607, 94
        %v922 = vpop.permute.xlu0 %921
        %923 = vrot.lane.b32.xlu0 %v612, 94
        %v924 = vpop.permute.xlu0 %923
        %925 = vrot.lane.b32.xlu0 %v615, 94
        %v926 = vpop.permute.xlu0 %925
        %927 = vrot.lane.b32.xlu0 %v620, 94
        %v928 = vpop.permute.xlu0 %927
        %929 = vrot.lane.b32.xlu0 %v623, 94
        %v930 = vpop.permute.xlu0 %929
        %v947 = vadd.f32 %v883, %v900
        %v948 = vadd.f32 %v884, %v902
        %v949 = vadd.f32 %v885, %v904
        %v950 = vadd.f32 %v886, %v906
        %v951 = vadd.f32 %v887, %v908
        %v952 = vadd.f32 %v888, %v910
        %v953 = vadd.f32 %v889, %v912
        %v954 = vadd.f32 %v890, %v914
        %v955 = vadd.f32 %v891, %v916
        %v956 = vadd.f32 %v892, %v918
        %v957 = vadd.f32 %v893, %v920
        %v958 = vadd.f32 %v894, %v922
        %v959 = vadd.f32 %v895, %v924
        %v960 = vadd.f32 %v896, %v926
        %v961 = vadd.f32 %v897, %v928
        %v962 = vadd.f32 %v898, %v930
        %963 = vst.msk [vmem:[%s386] sm:$0xff] %vm850, %v947
        %964 = vst.msk [vmem:[%s386 + $0x8] sm:$0xff] %vm850, %v948
        %965 = vst.msk [vmem:[%s386 + $0x10] sm:$0xff] %vm850, %v949
        %966 = vst.msk [vmem:[%s386 + $0x18] sm:$0xff] %vm850, %v950
        %967 = vst.msk [vmem:[%s386 + $0x20] sm:$0xff] %vm850, %v951
        %968 = vst.msk [vmem:[%s386 + $0x28] sm:$0xff] %vm850, %v952
        %969 = vst.msk [vmem:[%s386 + $0x30] sm:$0xff] %vm850, %v953
        %970 = vst.msk [vmem:[%s386 + $0x38] sm:$0xff] %vm850, %v954
        %971 = vst.msk [vmem:[%s386 + $0x40] sm:$0xff] %vm850, %v955
        %972 = vst.msk [vmem:[%s386 + $0x48] sm:$0xff] %vm850, %v956
        %973 = vst.msk [vmem:[%s386 + $0x50] sm:$0xff] %vm850, %v957
        %974 = vst.msk [vmem:[%s386 + $0x58] sm:$0xff] %vm850, %v958
        %975 = vst.msk [vmem:[%s386 + $0x60] sm:$0xff] %vm850, %v959
        %976 = vst.msk [vmem:[%s386 + $0x68] sm:$0xff] %vm850, %v960
        %977 = vst.msk [vmem:[%s386 + $0x70] sm:$0xff] %vm850, %v961
        %978 = vst.msk [vmem:[%s386 + $0x78] sm:$0xff] %vm850, %v962
        %979 = vrot.lane.b32.xlu0 %v564, 126
        %v980 = vpop.permute.xlu0 %979
        %981 = vrot.lane.b32.xlu0 %v567, 126
        %v982 = vpop.permute.xlu0 %981
        %983 = vrot.lane.b32.xlu0 %v572, 126
        %v984 = vpop.permute.xlu0 %983
        %985 = vrot.lane.b32.xlu0 %v575, 126
        %v986 = vpop.permute.xlu0 %985
        %987 = vrot.lane.b32.xlu0 %v580, 126
        %v988 = vpop.permute.xlu0 %987
        %989 = vrot.lane.b32.xlu0 %v583, 126
        %v990 = vpop.permute.xlu0 %989
        %991 = vrot.lane.b32.xlu0 %v588, 126
        %v992 = vpop.permute.xlu0 %991
        %993 = vrot.lane.b32.xlu0 %v591, 126
        %v994 = vpop.permute.xlu0 %993
        %995 = vrot.lane.b32.xlu0 %v596, 126
        %v996 = vpop.permute.xlu0 %995
        %997 = vrot.lane.b32.xlu0 %v599, 126
        %v998 = vpop.permute.xlu0 %997
        %999 = vrot.lane.b32.xlu0 %v604, 126
        %v1000 = vpop.permute.xlu0 %999
        %1001 = vrot.lane.b32.xlu0 %v607, 126
        %v1002 = vpop.permute.xlu0 %1001
        %1003 = vrot.lane.b32.xlu0 %v612, 126
        %v1004 = vpop.permute.xlu0 %1003
        %1005 = vrot.lane.b32.xlu0 %v615, 126
        %v1006 = vpop.permute.xlu0 %1005
        %1007 = vrot.lane.b32.xlu0 %v620, 126
        %v1008 = vpop.permute.xlu0 %1007
        %1009 = vrot.lane.b32.xlu0 %v623, 126
        %v1010 = vpop.permute.xlu0 %1009
        %v1027 = vadd.f32 %v564, %v980
        %v1028 = vadd.f32 %v567, %v982
        %v1029 = vadd.f32 %v572, %v984
        %v1030 = vadd.f32 %v575, %v986
        %v1031 = vadd.f32 %v580, %v988
        %v1032 = vadd.f32 %v583, %v990
        %v1033 = vadd.f32 %v588, %v992
        %v1034 = vadd.f32 %v591, %v994
        %v1035 = vadd.f32 %v596, %v996
        %v1036 = vadd.f32 %v599, %v998
        %v1037 = vadd.f32 %v604, %v1000
        %v1038 = vadd.f32 %v607, %v1002
        %v1039 = vadd.f32 %v612, %v1004
        %v1040 = vadd.f32 %v615, %v1006
        %v1041 = vadd.f32 %v620, %v1008
        %v1042 = vadd.f32 %v623, %v1010
        %1059 = vrot.lane.b32.xlu0 %v1027, 96
        %v1060 = vpop.permute.xlu0 %1059
        %1061 = vrot.lane.b32.xlu0 %v1028, 96
        %v1062 = vpop.permute.xlu0 %1061
        %1063 = vrot.lane.b32.xlu0 %v1029, 96
        %v1064 = vpop.permute.xlu0 %1063
        %1065 = vrot.lane.b32.xlu0 %v1030, 96
        %v1066 = vpop.permute.xlu0 %1065
        %1067 = vrot.lane.b32.xlu0 %v1031, 96
        %v1068 = vpop.permute.xlu0 %1067
        %1069 = vrot.lane.b32.xlu0 %v1032, 96
        %v1070 = vpop.permute.xlu0 %1069
        %1071 = vrot.lane.b32.xlu0 %v1033, 96
        %v1072 = vpop.permute.xlu0 %1071
        %1073 = vrot.lane.b32.xlu0 %v1034, 96
        %v1074 = vpop.permute.xlu0 %1073
        %1075 = vrot.lane.b32.xlu0 %v1035, 96
        %v1076 = vpop.permute.xlu0 %1075
        %1077 = vrot.lane.b32.xlu0 %v1036, 96
        %v1078 = vpop.permute.xlu0 %1077
        %1079 = vrot.lane.b32.xlu0 %v1037, 96
        %v1080 = vpop.permute.xlu0 %1079
        %1081 = vrot.lane.b32.xlu0 %v1038, 96
        %v1082 = vpop.permute.xlu0 %1081
        %1083 = vrot.lane.b32.xlu0 %v1039, 96
        %v1084 = vpop.permute.xlu0 %1083
        %1085 = vrot.lane.b32.xlu0 %v1040, 96
        %v1086 = vpop.permute.xlu0 %1085
        %1087 = vrot.lane.b32.xlu0 %v1041, 96
        %v1088 = vpop.permute.xlu0 %1087
        %1089 = vrot.lane.b32.xlu0 %v1042, 96
        %v1090 = vpop.permute.xlu0 %1089
        %1107 = vst.msk [vmem:[%s392] sm:$0xff] %vm850, %v1060
        %1108 = vst.msk [vmem:[%s392 + $0x8] sm:$0xff] %vm850, %v1062
        %1109 = vst.msk [vmem:[%s392 + $0x10] sm:$0xff] %vm850, %v1064
        %1110 = vst.msk [vmem:[%s392 + $0x18] sm:$0xff] %vm850, %v1066
        %1111 = vst.msk [vmem:[%s392 + $0x20] sm:$0xff] %vm850, %v1068
        %1112 = vst.msk [vmem:[%s392 + $0x28] sm:$0xff] %vm850, %v1070
        %1113 = vst.msk [vmem:[%s392 + $0x30] sm:$0xff] %vm850, %v1072
        %1114 = vst.msk [vmem:[%s392 + $0x38] sm:$0xff] %vm850, %v1074
        %1115 = vst.msk [vmem:[%s392 + $0x40] sm:$0xff] %vm850, %v1076
        %1116 = vst.msk [vmem:[%s392 + $0x48] sm:$0xff] %vm850, %v1078
        %1117 = vst.msk [vmem:[%s392 + $0x50] sm:$0xff] %vm850, %v1080
        %1118 = vst.msk [vmem:[%s392 + $0x58] sm:$0xff] %vm850, %v1082
        %1119 = vst.msk [vmem:[%s392 + $0x60] sm:$0xff] %vm850, %v1084
        %1120 = vst.msk [vmem:[%s392 + $0x68] sm:$0xff] %vm850, %v1086
        %1121 = vst.msk [vmem:[%s392 + $0x70] sm:$0xff] %vm850, %v1088
        %1122 = vst.msk [vmem:[%s392 + $0x78] sm:$0xff] %vm850, %v1090
        %v1123 = vmul.f32 %v564, 2.0
        %v1124 = vmul.f32 %v567, 2.0
        %v1125 = vmul.f32 %v572, 2.0
        %v1126 = vmul.f32 %v575, 2.0
        %v1127 = vmul.f32 %v580, 2.0
        %v1128 = vmul.f32 %v583, 2.0
        %v1129 = vmul.f32 %v588, 2.0
        %v1130 = vmul.f32 %v591, 2.0
        %v1131 = vmul.f32 %v596, 2.0
        %v1132 = vmul.f32 %v599, 2.0
        %v1133 = vmul.f32 %v604, 2.0
        %v1134 = vmul.f32 %v607, 2.0
        %v1135 = vmul.f32 %v612, 2.0
        %v1136 = vmul.f32 %v615, 2.0
        %v1137 = vmul.f32 %v620, 2.0
        %v1138 = vmul.f32 %v623, 2.0
        %1155 = vrot.lane.b32.xlu0 %v1123, 92
        %v1156 = vpop.permute.xlu0 %1155
        %1157 = vrot.lane.b32.xlu0 %v1124, 92
        %v1158 = vpop.permute.xlu0 %1157
        %1159 = vrot.lane.b32.xlu0 %v1125, 92
        %v1160 = vpop.permute.xlu0 %1159
        %1161 = vrot.lane.b32.xlu0 %v1126, 92
        %v1162 = vpop.permute.xlu0 %1161
        %1163 = vrot.lane.b32.xlu0 %v1127, 92
        %v1164 = vpop.permute.xlu0 %1163
        %1165 = vrot.lane.b32.xlu0 %v1128, 92
        %v1166 = vpop.permute.xlu0 %1165
        %1167 = vrot.lane.b32.xlu0 %v1129, 92
        %v1168 = vpop.permute.xlu0 %1167
        %1169 = vrot.lane.b32.xlu0 %v1130, 92
        %v1170 = vpop.permute.xlu0 %1169
        %1171 = vrot.lane.b32.xlu0 %v1131, 92
        %v1172 = vpop.permute.xlu0 %1171
        %1173 = vrot.lane.b32.xlu0 %v1132, 92
        %v1174 = vpop.permute.xlu0 %1173
        %1175 = vrot.lane.b32.xlu0 %v1133, 92
        %v1176 = vpop.permute.xlu0 %1175
        %1177 = vrot.lane.b32.xlu0 %v1134, 92
        %v1178 = vpop.permute.xlu0 %1177
        %1179 = vrot.lane.b32.xlu0 %v1135, 92
        %v1180 = vpop.permute.xlu0 %1179
        %1181 = vrot.lane.b32.xlu0 %v1136, 92
        %v1182 = vpop.permute.xlu0 %1181
        %1183 = vrot.lane.b32.xlu0 %v1137, 92
        %v1184 = vpop.permute.xlu0 %1183
        %1185 = vrot.lane.b32.xlu0 %v1138, 92
        %v1186 = vpop.permute.xlu0 %1185
        %1203 = vst.msk [vmem:[%s398] sm:$0xff] %vm850, %v1156
        %1204 = vst.msk [vmem:[%s398 + $0x8] sm:$0xff] %vm850, %v1158
        %1205 = vst.msk [vmem:[%s398 + $0x10] sm:$0xff] %vm850, %v1160
        %1206 = vst.msk [vmem:[%s398 + $0x18] sm:$0xff] %vm850, %v1162
        %1207 = vst.msk [vmem:[%s398 + $0x20] sm:$0xff] %vm850, %v1164
        %1208 = vst.msk [vmem:[%s398 + $0x28] sm:$0xff] %vm850, %v1166
        %1209 = vst.msk [vmem:[%s398 + $0x30] sm:$0xff] %vm850, %v1168
        %1210 = vst.msk [vmem:[%s398 + $0x38] sm:$0xff] %vm850, %v1170
        %1211 = vst.msk [vmem:[%s398 + $0x40] sm:$0xff] %vm850, %v1172
        %1212 = vst.msk [vmem:[%s398 + $0x48] sm:$0xff] %vm850, %v1174
        %1213 = vst.msk [vmem:[%s398 + $0x50] sm:$0xff] %vm850, %v1176
        %1214 = vst.msk [vmem:[%s398 + $0x58] sm:$0xff] %vm850, %v1178
        %1215 = vst.msk [vmem:[%s398 + $0x60] sm:$0xff] %vm850, %v1180
        %1216 = vst.msk [vmem:[%s398 + $0x68] sm:$0xff] %vm850, %v1182
        %1217 = vst.msk [vmem:[%s398 + $0x70] sm:$0xff] %vm850, %v1184
        %1218 = vst.msk [vmem:[%s398 + $0x78] sm:$0xff] %vm850, %v1186
        %v1219 = vpack.c.bf16 %v567, %v564
        %v1220 = vpack.c.bf16 %v575, %v572
        %v1221 = vpack.c.bf16 %v583, %v580
        %v1222 = vpack.c.bf16 %v591, %v588
        %v1223 = vpack.c.bf16 %v599, %v596
        %v1224 = vpack.c.bf16 %v607, %v604
        %v1225 = vpack.c.bf16 %v615, %v612
        %v1226 = vpack.c.bf16 %v623, %v620
        %v1235 = vunpack.c.l.b16 %v1219
        %v1236 = vunpack.c.h.b16 %v1219
        %v1237 = vunpack.c.l.b16 %v1220
        %v1238 = vunpack.c.h.b16 %v1220
        %v1239 = vunpack.c.l.b16 %v1221
        %v1240 = vunpack.c.h.b16 %v1221
        %v1241 = vunpack.c.l.b16 %v1222
        %v1242 = vunpack.c.h.b16 %v1222
        %v1243 = vunpack.c.l.b16 %v1223
        %v1244 = vunpack.c.h.b16 %v1223
        %v1245 = vunpack.c.l.b16 %v1224
        %v1246 = vunpack.c.h.b16 %v1224
        %v1247 = vunpack.c.l.b16 %v1225
        %v1248 = vunpack.c.h.b16 %v1225
        %v1249 = vunpack.c.l.b16 %v1226
        %v1250 = vunpack.c.h.b16 %v1226
        %v1251 = vpack.c.b16 %v1235, %v1235
        %v1252 = vpack.c.b16 %v1236, %v1236
        %v1253 = vpack.c.b16 %v1237, %v1237
        %v1254 = vpack.c.b16 %v1238, %v1238
        %v1255 = vpack.c.b16 %v1239, %v1239
        %v1256 = vpack.c.b16 %v1240, %v1240
        %v1257 = vpack.c.b16 %v1241, %v1241
        %v1258 = vpack.c.b16 %v1242, %v1242
        %v1259 = vpack.c.b16 %v1243, %v1243
        %v1260 = vpack.c.b16 %v1244, %v1244
        %v1261 = vpack.c.b16 %v1245, %v1245
        %v1262 = vpack.c.b16 %v1246, %v1246
        %v1263 = vpack.c.b16 %v1247, %v1247
        %v1264 = vpack.c.b16 %v1248, %v1248
        %v1265 = vpack.c.b16 %v1249, %v1249
        %v1266 = vpack.c.b16 %v1250, %v1250
        %vm1283 = vcmask 125952
        %1284 = vst.msk [vmem:[%s328] sm:$0xf] %vm1283, %v1251
        %1285 = vst.msk [vmem:[%s328 + $0x4] sm:$0xf] %vm1283, %v1252
        %1286 = vst.msk [vmem:[%s328 + $0x8] sm:$0xf] %vm1283, %v1253
        %1287 = vst.msk [vmem:[%s328 + $0xc] sm:$0xf] %vm1283, %v1254
        %1288 = vst.msk [vmem:[%s328 + $0x10] sm:$0xf] %vm1283, %v1255
        %1289 = vst.msk [vmem:[%s328 + $0x14] sm:$0xf] %vm1283, %v1256
        %1290 = vst.msk [vmem:[%s328 + $0x18] sm:$0xf] %vm1283, %v1257
        %1291 = vst.msk [vmem:[%s328 + $0x1c] sm:$0xf] %vm1283, %v1258
        %1292 = vst.msk [vmem:[%s328 + $0x20] sm:$0xf] %vm1283, %v1259
        %1293 = vst.msk [vmem:[%s328 + $0x24] sm:$0xf] %vm1283, %v1260
        %1294 = vst.msk [vmem:[%s328 + $0x28] sm:$0xf] %vm1283, %v1261
        %1295 = vst.msk [vmem:[%s328 + $0x2c] sm:$0xf] %vm1283, %v1262
        %1296 = vst.msk [vmem:[%s328 + $0x30] sm:$0xf] %vm1283, %v1263
        %1297 = vst.msk [vmem:[%s328 + $0x34] sm:$0xf] %vm1283, %v1264
        %1298 = vst.msk [vmem:[%s328 + $0x38] sm:$0xf] %vm1283, %v1265
        %1299 = vst.msk [vmem:[%s328 + $0x3c] sm:$0xf] %vm1283, %v1266
        %1300 = vrot.lane.b32.xlu0 %v1251, 112
        %v1301 = vpop.permute.xlu0 %1300
        %1302 = vrot.lane.b32.xlu0 %v1252, 112
        %v1303 = vpop.permute.xlu0 %1302
        %1304 = vrot.lane.b32.xlu0 %v1253, 112
        %v1305 = vpop.permute.xlu0 %1304
        %1306 = vrot.lane.b32.xlu0 %v1254, 112
        %v1307 = vpop.permute.xlu0 %1306
        %1308 = vrot.lane.b32.xlu0 %v1255, 112
        %v1309 = vpop.permute.xlu0 %1308
        %1310 = vrot.lane.b32.xlu0 %v1256, 112
        %v1311 = vpop.permute.xlu0 %1310
        %1312 = vrot.lane.b32.xlu0 %v1257, 112
        %v1313 = vpop.permute.xlu0 %1312
        %1314 = vrot.lane.b32.xlu0 %v1258, 112
        %v1315 = vpop.permute.xlu0 %1314
        %1316 = vrot.lane.b32.xlu0 %v1259, 112
        %v1317 = vpop.permute.xlu0 %1316
        %1318 = vrot.lane.b32.xlu0 %v1260, 112
        %v1319 = vpop.permute.xlu0 %1318
        %1320 = vrot.lane.b32.xlu0 %v1261, 112
        %v1321 = vpop.permute.xlu0 %1320
        %1322 = vrot.lane.b32.xlu0 %v1262, 112
        %v1323 = vpop.permute.xlu0 %1322
        %1324 = vrot.lane.b32.xlu0 %v1263, 112
        %v1325 = vpop.permute.xlu0 %1324
        %1326 = vrot.lane.b32.xlu0 %v1264, 112
        %v1327 = vpop.permute.xlu0 %1326
        %1328 = vrot.lane.b32.xlu0 %v1265, 112
        %v1329 = vpop.permute.xlu0 %1328
        %1330 = vrot.lane.b32.xlu0 %v1266, 112
        %v1331 = vpop.permute.xlu0 %1330
        %s1348 = scalar_lea.vmem %s328, 64 [#allocation2]
        %1349 = vst.msk [vmem:[%s1348] sm:$0xf] %vm1283, %v1301
        %1350 = vst.msk [vmem:[%s1348 + $0x4] sm:$0xf] %vm1283, %v1303
        %1351 = vst.msk [vmem:[%s1348 + $0x8] sm:$0xf] %vm1283, %v1305
        %1352 = vst.msk [vmem:[%s1348 + $0xc] sm:$0xf] %vm1283, %v1307
        %1353 = vst.msk [vmem:[%s1348 + $0x10] sm:$0xf] %vm1283, %v1309
        %1354 = vst.msk [vmem:[%s1348 + $0x14] sm:$0xf] %vm1283, %v1311
        %1355 = vst.msk [vmem:[%s1348 + $0x18] sm:$0xf] %vm1283, %v1313
        %1356 = vst.msk [vmem:[%s1348 + $0x1c] sm:$0xf] %vm1283, %v1315
        %1357 = vst.msk [vmem:[%s1348 + $0x20] sm:$0xf] %vm1283, %v1317
        %1358 = vst.msk [vmem:[%s1348 + $0x24] sm:$0xf] %vm1283, %v1319
        %1359 = vst.msk [vmem:[%s1348 + $0x28] sm:$0xf] %vm1283, %v1321
        %1360 = vst.msk [vmem:[%s1348 + $0x2c] sm:$0xf] %vm1283, %v1323
        %1361 = vst.msk [vmem:[%s1348 + $0x30] sm:$0xf] %vm1283, %v1325
        %1362 = vst.msk [vmem:[%s1348 + $0x34] sm:$0xf] %vm1283, %v1327
        %1363 = vst.msk [vmem:[%s1348 + $0x38] sm:$0xf] %vm1283, %v1329
        %1364 = vst.msk [vmem:[%s1348 + $0x3c] sm:$0xf] %vm1283, %v1331
        %s1365 = sand.u32 %s127, 1
        %s1366 = sand.u32 %s127, 1
        %s1367 = smul.addr %s1366, 128
        %s1368 = scalar_lea.vmem [#allocation2], %s1367
        %s1369 = smul.u32 16, %s20
        %p1370 = scmp.lt.s32.totalorder %s1369, 31
        %s1371 = scalar_select %p1370, %s1369, 31
        %s1372 = smul.addr %s1371, 8
        %s1373 = scalar_lea.vmem %s5, %s1372
        %s1374 = smul.u32 16, %s20
        %p1375 = scmp.lt.s32.totalorder %s1374, 31
        %s1376 = scalar_select %p1375, %s1374, 31
        %s1377 = smul.addr %s1376, 8
        %s1378 = scalar_lea.vmem %s6, %s1377
        %s1379 = smul.u32 16, %s20
        %p1380 = scmp.lt.s32.totalorder %s1379, 31
        %s1381 = scalar_select %p1380, %s1379, 31
        %s1382 = smul.addr %s1381, 8
        %s1383 = scalar_lea.vmem %s7, %s1382
        %s1384 = smul.u32 16, %s20
        %p1385 = scmp.lt.s32.totalorder %s1384, 31
        %s1386 = scalar_select %p1385, %s1384, 31
        %s1387 = smul.addr %s1386, 8
        %s1388 = scalar_lea.vmem %s8, %s1387
        // Predicated region
        $region37: #{tpu_custom_call.1} parent=35 // pred_check
          %p1389 = pneg %p137
        $region38: #{tpu_custom_call.1} parent=35 // pred_check_branch
          %1391 = sbr.rel (%p1389) target = $region40
        $region39: #{tpu_custom_call.1} parent=35 // pred_region
          %s1392 = smul.u32 16, %s20
          %s1393 = smul.addr %s1392, 4
          %s1394 = scalar_lea.vmem %s4, %s1393
          // Predicated region
          $region41: #{tpu_custom_call.1} parent=39 // pred_check
            _
          $region42: #{tpu_custom_call.1} parent=39 // pred_check_branch
            %1396 = sbr.rel (0) target = $region44
          $region43: #{tpu_custom_call.1} parent=39 // pred_region
            // Predicated region
            $region45: #{tpu_custom_call.1} parent=43 // pred_check
              _
            $region46: #{tpu_custom_call.1} parent=43 // pred_check_branch
              %1398 = sbr.rel target = $region48
            $region47: #{tpu_custom_call.1} parent=43 // pred_region
              // Predicated region
              $region60: #{tpu_custom_call.1} parent=47 // pred_check
                _
              $region61: #{tpu_custom_call.1} parent=47 // pred_check_branch
                %1476 = sbr.rel (0) target = $region63
              $region62: #{tpu_custom_call.1} parent=47 // pred_region
                loop: start=0, step=1, limit=1
                $region64: #{tpu_custom_call.1} parent=62 // loop_pre_header
                  _
                $region65: #{tpu_custom_call.1} parent=62 // loop_header
                  %s1478 = sphi 0, %s1482
                  %p1479 = scmp.ge.s32.totalorder %s1478, 1
                  %s1483 = sphi %s1368, %s1368
                  %s1484 = sphi %s1394, %s1394
                $region66: #{tpu_custom_call.1} parent=62 // loop_header_branch
                  %1481 = sbr.rel (%p1479) target = $region70
                $region67: #{tpu_custom_call.1} parent=62 // loop_body
                  _
                $region68: #{tpu_custom_call.1} parent=62 // loop_footer
                  %s1482 = sadd.s32 1, %s1478
                $region69: #{tpu_custom_call.1} parent=62 // loop_footer_branch
                  %1477 = sbr.rel target = $region65
                $region70: #{tpu_custom_call.1} parent=62 // loop_exit
                  _
                %s1486 = ssub.s32 16, 1
                loop: start=0, step=1, limit=1
                $region71: #{tpu_custom_call.1} parent=62 // loop_pre_header
                  _
                $region72: #{tpu_custom_call.1} parent=62 // loop_header
                  %s1488 = sphi 0, %s1492
                  %p1489 = scmp.ge.s32.totalorder %s1488, 1
                  %s1493 = sphi %s1368, %s1368
                  %s1494 = sphi %s1394, %s1394
                $region73: #{tpu_custom_call.1} parent=62 // loop_header_branch
                  %1491 = sbr.rel (%p1489) target = $region77
                $region74: #{tpu_custom_call.1} parent=62 // loop_body
                  %v1495 = vld [vmem:[%s1493] sm:%s1486]
                  %1496 = vst [vmem:[%s1494] sm:%s1486] %v1495
                  %v1497 = vld [vmem:[%s1493 + $0x4] sm:%s1486]
                  %1498 = vst [vmem:[%s1494 + $0x4] sm:%s1486] %v1497
                  %v1499 = vld [vmem:[%s1493 + $0x8] sm:%s1486]
                  %1500 = vst [vmem:[%s1494 + $0x8] sm:%s1486] %v1499
                  %v1501 = vld [vmem:[%s1493 + $0xc] sm:%s1486]
                  %1502 = vst [vmem:[%s1494 + $0xc] sm:%s1486] %v1501
                  %v1503 = vld [vmem:[%s1493 + $0x10] sm:%s1486]
                  %1504 = vst [vmem:[%s1494 + $0x10] sm:%s1486] %v1503
                  %v1505 = vld [vmem:[%s1493 + $0x14] sm:%s1486]
                  %1506 = vst [vmem:[%s1494 + $0x14] sm:%s1486] %v1505
                  %v1507 = vld [vmem:[%s1493 + $0x18] sm:%s1486]
                  %1508 = vst [vmem:[%s1494 + $0x18] sm:%s1486] %v1507
                  %v1509 = vld [vmem:[%s1493 + $0x1c] sm:%s1486]
                  %1510 = vst [vmem:[%s1494 + $0x1c] sm:%s1486] %v1509
                  %v1511 = vld [vmem:[%s1493 + $0x20] sm:%s1486]
                  %1512 = vst [vmem:[%s1494 + $0x20] sm:%s1486] %v1511
                  %v1513 = vld [vmem:[%s1493 + $0x24] sm:%s1486]
                  %1514 = vst [vmem:[%s1494 + $0x24] sm:%s1486] %v1513
                  %v1515 = vld [vmem:[%s1493 + $0x28] sm:%s1486]
                  %1516 = vst [vmem:[%s1494 + $0x28] sm:%s1486] %v1515
                  %v1517 = vld [vmem:[%s1493 + $0x2c] sm:%s1486]
                  %1518 = vst [vmem:[%s1494 + $0x2c] sm:%s1486] %v1517
                  %v1519 = vld [vmem:[%s1493 + $0x30] sm:%s1486]
                  %1520 = vst [vmem:[%s1494 + $0x30] sm:%s1486] %v1519
                  %v1521 = vld [vmem:[%s1493 + $0x34] sm:%s1486]
                  %1522 = vst [vmem:[%s1494 + $0x34] sm:%s1486] %v1521
                  %v1523 = vld [vmem:[%s1493 + $0x38] sm:%s1486]
                  %1524 = vst [vmem:[%s1494 + $0x38] sm:%s1486] %v1523
                  %v1525 = vld [vmem:[%s1493 + $0x3c] sm:%s1486]
                  %1526 = vst [vmem:[%s1494 + $0x3c] sm:%s1486] %v1525
                  %v1527 = vld [vmem:[%s1493 + $0x40] sm:%s1486]
                  %1528 = vst [vmem:[%s1494 + $0x80] sm:%s1486] %v1527
                  %v1529 = vld [vmem:[%s1493 + $0x44] sm:%s1486]
                  %1530 = vst [vmem:[%s1494 + $0x84] sm:%s1486] %v1529
                  %v1531 = vld [vmem:[%s1493 + $0x48] sm:%s1486]
                  %1532 = vst [vmem:[%s1494 + $0x88] sm:%s1486] %v1531
                  %v1533 = vld [vmem:[%s1493 + $0x4c] sm:%s1486]
                  %1534 = vst [vmem:[%s1494 + $0x8c] sm:%s1486] %v1533
                  %v1535 = vld [vmem:[%s1493 + $0x50] sm:%s1486]
                  %1536 = vst [vmem:[%s1494 + $0x90] sm:%s1486] %v1535
                  %v1537 = vld [vmem:[%s1493 + $0x54] sm:%s1486]
                  %1538 = vst [vmem:[%s1494 + $0x94] sm:%s1486] %v1537
                  %v1539 = vld [vmem:[%s1493 + $0x58] sm:%s1486]
                  %1540 = vst [vmem:[%s1494 + $0x98] sm:%s1486] %v1539
                  %v1541 = vld [vmem:[%s1493 + $0x5c] sm:%s1486]
                  %1542 = vst [vmem:[%s1494 + $0x9c] sm:%s1486] %v1541
                  %v1543 = vld [vmem:[%s1493 + $0x60] sm:%s1486]
                  %1544 = vst [vmem:[%s1494 + $0xa0] sm:%s1486] %v1543
                  %v1545 = vld [vmem:[%s1493 + $0x64] sm:%s1486]
                  %1546 = vst [vmem:[%s1494 + $0xa4] sm:%s1486] %v1545
                  %v1547 = vld [vmem:[%s1493 + $0x68] sm:%s1486]
                  %1548 = vst [vmem:[%s1494 + $0xa8] sm:%s1486] %v1547
                  %v1549 = vld [vmem:[%s1493 + $0x6c] sm:%s1486]
                  %1550 = vst [vmem:[%s1494 + $0xac] sm:%s1486] %v1549
                  %v1551 = vld [vmem:[%s1493 + $0x70] sm:%s1486]
                  %1552 = vst [vmem:[%s1494 + $0xb0] sm:%s1486] %v1551
                  %v1553 = vld [vmem:[%s1493 + $0x74] sm:%s1486]
                  %1554 = vst [vmem:[%s1494 + $0xb4] sm:%s1486] %v1553
                  %v1555 = vld [vmem:[%s1493 + $0x78] sm:%s1486]
                  %1556 = vst [vmem:[%s1494 + $0xb8] sm:%s1486] %v1555
                  %v1557 = vld [vmem:[%s1493 + $0x7c] sm:%s1486]
                  %1558 = vst [vmem:[%s1494 + $0xbc] sm:%s1486] %v1557
                $region75: #{tpu_custom_call.1} parent=62 // loop_footer
                  %s1492 = sadd.s32 1, %s1488
                $region76: #{tpu_custom_call.1} parent=62 // loop_footer_branch
                  %1487 = sbr.rel target = $region72
                $region77: #{tpu_custom_call.1} parent=62 // loop_exit
                  _
              $region63: #{tpu_custom_call.1} parent=47 // pred_fallthru
                _
            $region48: #{tpu_custom_call.1} parent=43 // pred_fallthru
              _
            // Predicated region
            $region49: #{tpu_custom_call.1} parent=43 // pred_check
              _
            $region50: #{tpu_custom_call.1} parent=43 // pred_check_branch
              %1400 = sbr.rel (0) target = $region52
            $region51: #{tpu_custom_call.1} parent=43 // pred_region
              %s1402 = ssub.s32 16, 1
              loop: start=0, step=1, limit=1
              $region53: #{tpu_custom_call.1} parent=51 // loop_pre_header
                _
              $region54: #{tpu_custom_call.1} parent=51 // loop_header
                %s1404 = sphi 0, %s1408
                %p1405 = scmp.ge.s32.totalorder %s1404, 1
                %s1409 = sphi %s1368, %s1368
                %s1410 = sphi %s1394, %s1394
              $region55: #{tpu_custom_call.1} parent=51 // loop_header_branch
                %1407 = sbr.rel (%p1405) target = $region59
              $region56: #{tpu_custom_call.1} parent=51 // loop_body
                %v1411 = vld [vmem:[%s1409] sm:%s1402]
                %1412 = vst [vmem:[%s1410] sm:%s1402] %v1411
                %v1413 = vld [vmem:[%s1409 + $0x4] sm:%s1402]
                %1414 = vst [vmem:[%s1410 + $0x4] sm:%s1402] %v1413
                %v1415 = vld [vmem:[%s1409 + $0x8] sm:%s1402]
                %1416 = vst [vmem:[%s1410 + $0x8] sm:%s1402] %v1415
                %v1417 = vld [vmem:[%s1409 + $0xc] sm:%s1402]
                %1418 = vst [vmem:[%s1410 + $0xc] sm:%s1402] %v1417
                %v1419 = vld [vmem:[%s1409 + $0x10] sm:%s1402]
                %1420 = vst [vmem:[%s1410 + $0x10] sm:%s1402] %v1419
                %v1421 = vld [vmem:[%s1409 + $0x14] sm:%s1402]
                %1422 = vst [vmem:[%s1410 + $0x14] sm:%s1402] %v1421
                %v1423 = vld [vmem:[%s1409 + $0x18] sm:%s1402]
                %1424 = vst [vmem:[%s1410 + $0x18] sm:%s1402] %v1423
                %v1425 = vld [vmem:[%s1409 + $0x1c] sm:%s1402]
                %1426 = vst [vmem:[%s1410 + $0x1c] sm:%s1402] %v1425
                %v1427 = vld [vmem:[%s1409 + $0x20] sm:%s1402]
                %1428 = vst [vmem:[%s1410 + $0x20] sm:%s1402] %v1427
                %v1429 = vld [vmem:[%s1409 + $0x24] sm:%s1402]
                %1430 = vst [vmem:[%s1410 + $0x24] sm:%s1402] %v1429
                %v1431 = vld [vmem:[%s1409 + $0x28] sm:%s1402]
                %1432 = vst [vmem:[%s1410 + $0x28] sm:%s1402] %v1431
                %v1433 = vld [vmem:[%s1409 + $0x2c] sm:%s1402]
                %1434 = vst [vmem:[%s1410 + $0x2c] sm:%s1402] %v1433
                %v1435 = vld [vmem:[%s1409 + $0x30] sm:%s1402]
                %1436 = vst [vmem:[%s1410 + $0x30] sm:%s1402] %v1435
                %v1437 = vld [vmem:[%s1409 + $0x34] sm:%s1402]
                %1438 = vst [vmem:[%s1410 + $0x34] sm:%s1402] %v1437
                %v1439 = vld [vmem:[%s1409 + $0x38] sm:%s1402]
                %1440 = vst [vmem:[%s1410 + $0x38] sm:%s1402] %v1439
                %v1441 = vld [vmem:[%s1409 + $0x3c] sm:%s1402]
                %1442 = vst [vmem:[%s1410 + $0x3c] sm:%s1402] %v1441
                %v1443 = vld [vmem:[%s1409 + $0x40] sm:%s1402]
                %1444 = vst [vmem:[%s1410 + $0x80] sm:%s1402] %v1443
                %v1445 = vld [vmem:[%s1409 + $0x44] sm:%s1402]
                %1446 = vst [vmem:[%s1410 + $0x84] sm:%s1402] %v1445
                %v1447 = vld [vmem:[%s1409 + $0x48] sm:%s1402]
                %1448 = vst [vmem:[%s1410 + $0x88] sm:%s1402] %v1447
                %v1449 = vld [vmem:[%s1409 + $0x4c] sm:%s1402]
                %1450 = vst [vmem:[%s1410 + $0x8c] sm:%s1402] %v1449
                %v1451 = vld [vmem:[%s1409 + $0x50] sm:%s1402]
                %1452 = vst [vmem:[%s1410 + $0x90] sm:%s1402] %v1451
                %v1453 = vld [vmem:[%s1409 + $0x54] sm:%s1402]
                %1454 = vst [vmem:[%s1410 + $0x94] sm:%s1402] %v1453
                %v1455 = vld [vmem:[%s1409 + $0x58] sm:%s1402]
                %1456 = vst [vmem:[%s1410 + $0x98] sm:%s1402] %v1455
                %v1457 = vld [vmem:[%s1409 + $0x5c] sm:%s1402]
                %1458 = vst [vmem:[%s1410 + $0x9c] sm:%s1402] %v1457
                %v1459 = vld [vmem:[%s1409 + $0x60] sm:%s1402]
                %1460 = vst [vmem:[%s1410 + $0xa0] sm:%s1402] %v1459
                %v1461 = vld [vmem:[%s1409 + $0x64] sm:%s1402]
                %1462 = vst [vmem:[%s1410 + $0xa4] sm:%s1402] %v1461
                %v1463 = vld [vmem:[%s1409 + $0x68] sm:%s1402]
                %1464 = vst [vmem:[%s1410 + $0xa8] sm:%s1402] %v1463
                %v1465 = vld [vmem:[%s1409 + $0x6c] sm:%s1402]
                %1466 = vst [vmem:[%s1410 + $0xac] sm:%s1402] %v1465
                %v1467 = vld [vmem:[%s1409 + $0x70] sm:%s1402]
                %1468 = vst [vmem:[%s1410 + $0xb0] sm:%s1402] %v1467
                %v1469 = vld [vmem:[%s1409 + $0x74] sm:%s1402]
                %1470 = vst [vmem:[%s1410 + $0xb4] sm:%s1402] %v1469
                %v1471 = vld [vmem:[%s1409 + $0x78] sm:%s1402]
                %1472 = vst [vmem:[%s1410 + $0xb8] sm:%s1402] %v1471
                %v1473 = vld [vmem:[%s1409 + $0x7c] sm:%s1402]
                %1474 = vst [vmem:[%s1410 + $0xbc] sm:%s1402] %v1473
              $region57: #{tpu_custom_call.1} parent=51 // loop_footer
                %s1408 = sadd.s32 1, %s1404
              $region58: #{tpu_custom_call.1} parent=51 // loop_footer_branch
                %1403 = sbr.rel target = $region54
              $region59: #{tpu_custom_call.1} parent=51 // loop_exit
                _
            $region52: #{tpu_custom_call.1} parent=43 // pred_fallthru
              _
          $region44: #{tpu_custom_call.1} parent=39 // pred_fallthru
            _
          %1559 = vnop
        $region40: #{tpu_custom_call.1} parent=35 // pred_fallthru
          _
        // Predicated region
        $region78: #{tpu_custom_call.1} parent=35 // pred_check
          %p1560 = pneg %p163
        $region79: #{tpu_custom_call.1} parent=35 // pred_check_branch
          %1562 = sbr.rel (%p1560) target = $region81
        $region80: #{tpu_custom_call.1} parent=35 // pred_region
          %s1563 = smul.u32 16, %s20
        $region81: #{tpu_custom_call.1} parent=35 // pred_fallthru
          _
        // Predicated region
        $region82: #{tpu_custom_call.1} parent=35 // pred_check
          %p1564 = pneg %p189
        $region83: #{tpu_custom_call.1} parent=35 // pred_check_branch
          %1566 = sbr.rel (%p1564) target = $region85
        $region84: #{tpu_custom_call.1} parent=35 // pred_region
          %s1567 = smul.u32 16, %s20
        $region85: #{tpu_custom_call.1} parent=35 // pred_fallthru
          _
        // Predicated region
        $region86: #{tpu_custom_call.1} parent=35 // pred_check
          %p1568 = pneg %p215
        $region87: #{tpu_custom_call.1} parent=35 // pred_check_branch
          %1570 = sbr.rel (%p1568) target = $region89
        $region88: #{tpu_custom_call.1} parent=35 // pred_region
          %s1571 = smul.u32 16, %s20
        $region89: #{tpu_custom_call.1} parent=35 // pred_fallthru
          _
        // Predicated region
        $region90: #{tpu_custom_call.1} parent=35 // pred_check
          %p1572 = pneg %p241
        $region91: #{tpu_custom_call.1} parent=35 // pred_check_branch
          %1574 = sbr.rel (%p1572) target = $region93
        $region92: #{tpu_custom_call.1} parent=35 // pred_region
          %s1575 = smul.u32 16, %s20
        $region93: #{tpu_custom_call.1} parent=35 // pred_fallthru
          _
      $region36: #{tpu_custom_call.1} parent=5 // pred_fallthru
        _
      %p1576 = scmp.le.s32.totalorder 2, %s15
      // Predicated region
      $region94: #{tpu_custom_call.1} parent=5 // pred_check
        %p1577 = pneg %p1576
      $region95: #{tpu_custom_call.1} parent=5 // pred_check_branch
        %1579 = sbr.rel (%p1577) target = $region97
      $region96: #{tpu_custom_call.1} parent=5 // pred_region
        %s1580 = ssub.s32 %s15, 2
        // Predicated region
        $region98: #{tpu_custom_call.1} parent=96 // pred_check
          %p1581 = pneg %p143
        $region99: #{tpu_custom_call.1} parent=96 // pred_check_branch
          %1583 = sbr.rel (%p1581) target = $region101
        $region100: #{tpu_custom_call.1} parent=96 // pred_region
          %s1584 = sand.u32 %s128, 1
          %s1585 = sand.u32 %s128, 1
          %s1586 = smul.addr %s1585, 128
          %s1587 = scalar_lea.vmem [#allocation2], %s1586
        $region101: #{tpu_custom_call.1} parent=96 // pred_fallthru
          _
        // Predicated region
        $region102: #{tpu_custom_call.1} parent=96 // pred_check
          %p1588 = pneg %p169
        $region103: #{tpu_custom_call.1} parent=96 // pred_check_branch
          %1590 = sbr.rel (%p1588) target = $region105
        $region104: #{tpu_custom_call.1} parent=96 // pred_region
          %s1591 = smul.u32 16, %s21
          %p1592 = scmp.lt.s32.totalorder %s1591, 31
          %s1593 = scalar_select %p1592, %s1591, 31
          %s1594 = smul.addr %s1593, 8
          %s1595 = scalar_lea.vmem %s5, %s1594
        $region105: #{tpu_custom_call.1} parent=96 // pred_fallthru
          _
        // Predicated region
        $region106: #{tpu_custom_call.1} parent=96 // pred_check
          %p1596 = pneg %p195
        $region107: #{tpu_custom_call.1} parent=96 // pred_check_branch
          %1598 = sbr.rel (%p1596) target = $region109
        $region108: #{tpu_custom_call.1} parent=96 // pred_region
          %s1599 = smul.u32 16, %s21
          %p1600 = scmp.lt.s32.totalorder %s1599, 31
          %s1601 = scalar_select %p1600, %s1599, 31
          %s1602 = smul.addr %s1601, 8
          %s1603 = scalar_lea.vmem %s6, %s1602
        $region109: #{tpu_custom_call.1} parent=96 // pred_fallthru
          _
        // Predicated region
        $region110: #{tpu_custom_call.1} parent=96 // pred_check
          %p1604 = pneg %p221
        $region111: #{tpu_custom_call.1} parent=96 // pred_check_branch
          %1606 = sbr.rel (%p1604) target = $region113
        $region112: #{tpu_custom_call.1} parent=96 // pred_region
          %s1607 = smul.u32 16, %s21
          %p1608 = scmp.lt.s32.totalorder %s1607, 31
          %s1609 = scalar_select %p1608, %s1607, 31
          %s1610 = smul.addr %s1609, 8
          %s1611 = scalar_lea.vmem %s7, %s1610
        $region113: #{tpu_custom_call.1} parent=96 // pred_fallthru
          _
        // Predicated region
        $region114: #{tpu_custom_call.1} parent=96 // pred_check
          %p1612 = pneg %p247
        $region115: #{tpu_custom_call.1} parent=96 // pred_check_branch
          %1614 = sbr.rel (%p1612) target = $region117
        $region116: #{tpu_custom_call.1} parent=96 // pred_region
          %s1615 = smul.u32 16, %s21
          %p1616 = scmp.lt.s32.totalorder %s1615, 31
          %s1617 = scalar_select %p1616, %s1615, 31
          %s1618 = smul.addr %s1617, 8
          %s1619 = scalar_lea.vmem %s8, %s1618
        $region117: #{tpu_custom_call.1} parent=96 // pred_fallthru
          _
      $region97: #{tpu_custom_call.1} parent=5 // pred_fallthru
        _
    $region6: #{tpu_custom_call.1} parent=1 // loop_footer
      %s19 = sadd.s32 1, %s15
    $region7: #{tpu_custom_call.1} parent=1 // loop_footer_branch
      %14 = sbr.rel target = $region3
    $region8: #{tpu_custom_call.1} parent=1 // loop_exit
      _

</llo_original>
